<compile_context>
chip_gen: v7x
topology: tpu7x:2x2x1
jax: 0.10.0
libtpu: 0.0.40
codegen_flags: <defaults>
</compile_context>

<pallas_src>
import jax
import jax.numpy as jnp
import numpy as np
from jax.experimental import pallas as pl
from jax.experimental.pallas import tpu as pltpu

EPS = 1e-6


# ---------------------------------------------------------------------------
# Fused kernel: in-VMEM weight sampling + 2-layer MLP forward
# ---------------------------------------------------------------------------
def _vi_mlp_kernel(x_ref,
                   mu_w1_ref, sg_w1_ref, z_w1_ref,
                   mu_b1_ref, sg_b1_ref, z_b1_ref,
                   mu_w2_ref, sg_w2_ref, z_w2_ref,
                   mu_b2_ref, sg_b2_ref, z_b2_ref,
                   out_ref):
    def sample(mu_ref, sg_ref, z_ref):
        # p = mu + clamp(sigma, min=eps) * z   (kept in f32: sigma ~ 1e-6)
        return mu_ref[...] + jnp.maximum(sg_ref[...], EPS) * z_ref[...]

    w1 = sample(mu_w1_ref, sg_w1_ref, z_w1_ref)          # (D, H)  f32
    b1 = sample(mu_b1_ref, sg_b1_ref, z_b1_ref)          # (1, H)  f32
    w2 = sample(mu_w2_ref, sg_w2_ref, z_w2_ref)          # (H, Do) f32
    b2 = sample(mu_b2_ref, sg_b2_ref, z_b2_ref)          # (1, Do) f32

    x = x_ref[...].astype(jnp.bfloat16)                  # (TILE_N, D)
    h = jnp.dot(x, w1.astype(jnp.bfloat16),
                preferred_element_type=jnp.float32)      # f32 accumulate
    h = jnp.maximum(h + b1, 0.0)                         # bias + ReLU (f32)
    y = jnp.dot(h.astype(jnp.bfloat16), w2.astype(jnp.bfloat16),
                preferred_element_type=jnp.float32)
    out_ref[...] = (y + b2).astype(out_ref.dtype)


def vi_mlp_forward(x2d, mu, sigma, z, *, tile_n=512):
    """Run the fused sampling + MLP kernel on (N, D) rows."""
    n, d = x2d.shape
    d_hidden = mu["w1"].shape[1]
    d_out = mu["w2"].shape[1]
    assert d % 128 == 0 and d_hidden % 128 == 0 and d_out % 128 == 0, (
        "feature dims must be lane-dense multiples of 128")

    # Row tile: multiple of 8 sublanes; pad N up to a tile multiple (tail tile).
    tile_n = max(8, min(tile_n, ((n + 7) // 8) * 8))
    n_pad = pl.cdiv(n, tile_n) * tile_n
    if n_pad != n:
        x2d = jnp.pad(x2d, ((0, n_pad - n), (0, 0)))
    grid = (n_pad // tile_n,)

    def resident(shape):
        # full-array block, constant index_map -> stays in VMEM across steps
        return pl.BlockSpec(shape, lambda i: (0, 0))

    in_specs = (
        [pl.BlockSpec((tile_n, d), lambda i: (i, 0))]
        + [resident((d, d_hidden))] * 3
        + [resident((1, d_hidden))] * 3
        + [resident((d_hidden, d_out))] * 3
        + [resident((1, d_out))] * 3
    )
    out_spec = pl.BlockSpec((tile_n, d_out), lambda i: (i, 0))

    flops = 2 * n_pad * (d * d_hidden + d_hidden * d_out)
    param_bytes = 3 * 4 * (d * d_hidden + d_hidden + d_hidden * d_out + d_out)
    bytes_accessed = 4 * n_pad * (d + d_out) + param_bytes

    y = pl.pallas_call(
        _vi_mlp_kernel,
        out_shape=jax.ShapeDtypeStruct((n_pad, d_out), x2d.dtype),
        grid=grid,
        in_specs=in_specs,
        out_specs=out_spec,
        compiler_params=pltpu.CompilerParams(
            dimension_semantics=("parallel",),
            vmem_limit_bytes=32 * 1024 * 1024,
        ),
        cost_estimate=pl.CostEstimate(
            flops=flops, transcendentals=0, bytes_accessed=bytes_accessed),
    )(x2d,
      mu["w1"], sigma["w1"], z["w1"],
      mu["b1"], sigma["b1"], z["b1"],
      mu["w2"], sigma["w2"], z["w2"],
      mu["b2"], sigma["b2"], z["b2"])
    return y[:n]


# ---------------------------------------------------------------------------
# VariationalInferenceModel forward
# ---------------------------------------------------------------------------
def draw_noise(key, mu_params):
    """z = randn_like(p) for every parameter (same keys => reproducible)."""
    z = {}
    for name in ("w1", "b1", "w2", "b2"):
        key, sub = jax.random.split(key)
        z[name] = jax.random.normal(sub, mu_params[name].shape,
                                    mu_params[name].dtype)
    return z


def vi_forward(x, mu_params, sigma_params, key, *, tile_n=512):
    """Mirror of VariationalInferenceModel.forward:
      1. p = mu + clamp(sigma, eps) * randn_like(p)  (fused into the kernel)
      2. base_model(**x, return_dict=True)           (token-wise 2-layer MLP)
    """
    z = draw_noise(key, mu_params)
    inp = x["inputs_embeds"]                          # (B, S, D)
    b, s, d = inp.shape
    x2d = inp.reshape(b * s, d)                       # glue reshape in plain JAX
    y2d = vi_mlp_forward(x2d, mu_params, sigma_params, z, tile_n=tile_n)
    return {"last_hidden_state": y2d.reshape(b, s, -1)}


# Pure-JAX reference (same bf16-in / f32-accumulate recipe as the kernel).
def vi_forward_ref(x, mu, sigma, z):
    def sample(name):
        return mu[name] + jnp.maximum(sigma[name], EPS) * z[name]
    w1, b1, w2, b2 = sample("w1"), sample("b1"), sample("w2"), sample("b2")
    inp = x["inputs_embeds"]
    b, s, d = inp.shape
    x2d = inp.reshape(b * s, d)
    h = jnp.dot(x2d.astype(jnp.bfloat16), w1.astype(jnp.bfloat16),
                preferred_element_type=jnp.float32) + b1
    h = jnp.maximum(h, 0.0)
    y = jnp.dot(h.astype(jnp.bfloat16), w2.astype(jnp.bfloat16),
                preferred_element_type=jnp.float32) + b2
    return y.reshape(b, s, -1)


# ---------------------------------------------------------------------------
# Parameter construction (mu network; sigma = eps * ones, as in __init__)
# ---------------------------------------------------------------------------
def make_params(key, d_model, d_hidden):
    k1, k2 = jax.random.split(key)
    mu = {
        "w1": jax.random.normal(k1, (d_model, d_hidden), jnp.float32)
              * (1.0 / jnp.sqrt(d_model)),
        "b1": jnp.zeros((1, d_hidden), jnp.float32),
        "w2": jax.random.normal(k2, (d_hidden, d_model), jnp.float32)
              * (1.0 / jnp.sqrt(d_hidden)),
        "b2": jnp.zeros((1, d_model), jnp.float32),
    }
    sigma = {k: jnp.full_like(v, EPS) for k, v in mu.items()}
    return mu, sigma


if __name__ == "__main__":
    # Lane-dense feature dims (multiples of 128); N = B*S not a tile multiple
    # so the padded-tail path and the >1-step grid are both exercised.
    B, S, D, H = 2, 200, 128, 256

    root = jax.random.PRNGKey(0)
    k_param, k_input, k_noise = jax.random.split(root, 3)

    mu_params, sigma_params = make_params(k_param, D, H)
    x = {"inputs_embeds": jax.random.normal(k_input, (B, S, D), jnp.float32)}

    out = vi_forward(x, mu_params, sigma_params, k_noise, tile_n=128)
    jax.block_until_ready(out["last_hidden_state"])
    assert out["last_hidden_state"].shape == (B, S, D)

    # Correctness vs a z-matched pure-JAX reference.
    z = draw_noise(k_noise, mu_params)
    ref = vi_forward_ref(x, mu_params, sigma_params, z)
    np.testing.assert_allclose(np.asarray(out["last_hidden_state"]),
                               np.asarray(ref), atol=1e-2, rtol=1e-2)

    print("KERNEL_OK")
</pallas_src>

<mosaic_0001>
module attributes {stable_mosaic.version = 11 : i64} {
  func.func @_vi_mlp_kernel(%arg0: i32, %arg1: memref<128x128xf32, #tpu.memory_space<vmem>>, %arg2: memref<128x256xf32, #tpu.memory_space<vmem>>, %arg3: memref<128x256xf32, #tpu.memory_space<vmem>>, %arg4: memref<128x256xf32, #tpu.memory_space<vmem>>, %arg5: memref<1x256xf32, #tpu.memory_space<vmem>>, %arg6: memref<1x256xf32, #tpu.memory_space<vmem>>, %arg7: memref<1x256xf32, #tpu.memory_space<vmem>>, %arg8: memref<256x128xf32, #tpu.memory_space<vmem>>, %arg9: memref<256x128xf32, #tpu.memory_space<vmem>>, %arg10: memref<256x128xf32, #tpu.memory_space<vmem>>, %arg11: memref<1x128xf32, #tpu.memory_space<vmem>>, %arg12: memref<1x128xf32, #tpu.memory_space<vmem>>, %arg13: memref<1x128xf32, #tpu.memory_space<vmem>>, %arg14: memref<128x128xf32, #tpu.memory_space<vmem>>) attributes {dimension_semantics = [#tpu.dimension_semantics<parallel>], iteration_bounds = array<i64: 4>, scalar_prefetch = 0 : i64, scratch_operands = 0 : i64, tpu.core_type = #tpu.core_type<tc>, window_params = [{transform_indices = @transform_0, window_bounds = array<i64: 128, 128>}, {pipeline_mode = #tpu.pipeline_mode<synchronous>, transform_indices = @transform_1, window_bounds = array<i64: 128, 256>}, {pipeline_mode = #tpu.pipeline_mode<synchronous>, transform_indices = @transform_2, window_bounds = array<i64: 128, 256>}, {pipeline_mode = #tpu.pipeline_mode<synchronous>, transform_indices = @transform_3, window_bounds = array<i64: 128, 256>}, {pipeline_mode = #tpu.pipeline_mode<synchronous>, transform_indices = @transform_4, window_bounds = array<i64: 1, 256>}, {pipeline_mode = #tpu.pipeline_mode<synchronous>, transform_indices = @transform_5, window_bounds = array<i64: 1, 256>}, {pipeline_mode = #tpu.pipeline_mode<synchronous>, transform_indices = @transform_6, window_bounds = array<i64: 1, 256>}, {pipeline_mode = #tpu.pipeline_mode<synchronous>, transform_indices = @transform_7, window_bounds = array<i64: 256, 128>}, {pipeline_mode = #tpu.pipeline_mode<synchronous>, transform_indices = @transform_8, window_bounds = array<i64: 256, 128>}, {pipeline_mode = #tpu.pipeline_mode<synchronous>, transform_indices = @transform_9, window_bounds = array<i64: 256, 128>}, {pipeline_mode = #tpu.pipeline_mode<synchronous>, transform_indices = @transform_10, window_bounds = array<i64: 1, 128>}, {pipeline_mode = #tpu.pipeline_mode<synchronous>, transform_indices = @transform_11, window_bounds = array<i64: 1, 128>}, {pipeline_mode = #tpu.pipeline_mode<synchronous>, transform_indices = @transform_12, window_bounds = array<i64: 1, 128>}, {transform_indices = @transform_13, window_bounds = array<i64: 128, 128>}]} {
    %c0 = arith.constant 0 : index
    %c0_0 = arith.constant 0 : index
    %0 = vector.load %arg2[%c0, %c0_0] : memref<128x256xf32, #tpu.memory_space<vmem>>, vector<128x256xf32>
    %c0_1 = arith.constant 0 : index
    %c0_2 = arith.constant 0 : index
    %1 = vector.load %arg3[%c0_1, %c0_2] : memref<128x256xf32, #tpu.memory_space<vmem>>, vector<128x256xf32>
    %cst = arith.constant 9.99999997E-7 : f32
    %2 = vector.broadcast %cst : f32 to vector<128x256xf32>
    %3 = arith.maximumf %1, %2 : vector<128x256xf32>
    %c0_3 = arith.constant 0 : index
    %c0_4 = arith.constant 0 : index
    %4 = vector.load %arg4[%c0_3, %c0_4] : memref<128x256xf32, #tpu.memory_space<vmem>>, vector<128x256xf32>
    %5 = arith.mulf %3, %4 : vector<128x256xf32>
    %6 = arith.addf %0, %5 : vector<128x256xf32>
    %c0_5 = arith.constant 0 : index
    %c0_6 = arith.constant 0 : index
    %7 = vector.load %arg5[%c0_5, %c0_6] : memref<1x256xf32, #tpu.memory_space<vmem>>, vector<1x256xf32>
    %c0_7 = arith.constant 0 : index
    %c0_8 = arith.constant 0 : index
    %8 = vector.load %arg6[%c0_7, %c0_8] : memref<1x256xf32, #tpu.memory_space<vmem>>, vector<1x256xf32>
    %cst_9 = arith.constant 9.99999997E-7 : f32
    %9 = vector.broadcast %cst_9 : f32 to vector<1x256xf32>
    %10 = arith.maximumf %8, %9 : vector<1x256xf32>
    %c0_10 = arith.constant 0 : index
    %c0_11 = arith.constant 0 : index
    %11 = vector.load %arg7[%c0_10, %c0_11] : memref<1x256xf32, #tpu.memory_space<vmem>>, vector<1x256xf32>
    %12 = arith.mulf %10, %11 : vector<1x256xf32>
    %13 = arith.addf %7, %12 : vector<1x256xf32>
    %c0_12 = arith.constant 0 : index
    %c0_13 = arith.constant 0 : index
    %14 = vector.load %arg8[%c0_12, %c0_13] : memref<256x128xf32, #tpu.memory_space<vmem>>, vector<256x128xf32>
    %c0_14 = arith.constant 0 : index
    %c0_15 = arith.constant 0 : index
    %15 = vector.load %arg9[%c0_14, %c0_15] : memref<256x128xf32, #tpu.memory_space<vmem>>, vector<256x128xf32>
    %cst_16 = arith.constant 9.99999997E-7 : f32
    %16 = vector.broadcast %cst_16 : f32 to vector<256x128xf32>
    %17 = arith.maximumf %15, %16 : vector<256x128xf32>
    %c0_17 = arith.constant 0 : index
    %c0_18 = arith.constant 0 : index
    %18 = vector.load %arg10[%c0_17, %c0_18] : memref<256x128xf32, #tpu.memory_space<vmem>>, vector<256x128xf32>
    %19 = arith.mulf %17, %18 : vector<256x128xf32>
    %20 = arith.addf %14, %19 : vector<256x128xf32>
    %c0_19 = arith.constant 0 : index
    %c0_20 = arith.constant 0 : index
    %21 = vector.load %arg11[%c0_19, %c0_20] : memref<1x128xf32, #tpu.memory_space<vmem>>, vector<1x128xf32>
    %c0_21 = arith.constant 0 : index
    %c0_22 = arith.constant 0 : index
    %22 = vector.load %arg12[%c0_21, %c0_22] : memref<1x128xf32, #tpu.memory_space<vmem>>, vector<1x128xf32>
    %cst_23 = arith.constant 9.99999997E-7 : f32
    %23 = vector.broadcast %cst_23 : f32 to vector<1x128xf32>
    %24 = arith.maximumf %22, %23 : vector<1x128xf32>
    %c0_24 = arith.constant 0 : index
    %c0_25 = arith.constant 0 : index
    %25 = vector.load %arg13[%c0_24, %c0_25] : memref<1x128xf32, #tpu.memory_space<vmem>>, vector<1x128xf32>
    %26 = arith.mulf %24, %25 : vector<1x128xf32>
    %27 = arith.addf %21, %26 : vector<1x128xf32>
    %c0_26 = arith.constant 0 : index
    %c0_27 = arith.constant 0 : index
    %28 = vector.load %arg1[%c0_26, %c0_27] : memref<128x128xf32, #tpu.memory_space<vmem>>, vector<128x128xf32>
    %29 = arith.truncf %28 : vector<128x128xf32> to vector<128x128xbf16>
    %30 = arith.truncf %6 : vector<128x256xf32> to vector<128x256xbf16>
    %cst_28 = arith.constant dense<0.000000e+00> : vector<128x256xf32>
    %31 = tpu.matmul %29, %30, %cst_28 {dimension_numbers = #tpu.dot_dimension_numbers<[1], [0], [0], [1], [0, 0, 1, 1], [], []>} : vector<128x128xbf16>, vector<128x256xbf16>, vector<128x256xf32> -> vector<128x256xf32>
    %32 = vector.broadcast %13 : vector<1x256xf32> to vector<128x256xf32>
    %33 = arith.addf %31, %32 : vector<128x256xf32>
    %cst_29 = arith.constant 0.000000e+00 : f32
    %34 = vector.broadcast %cst_29 : f32 to vector<128x256xf32>
    %35 = arith.maximumf %33, %34 : vector<128x256xf32>
    %36 = arith.truncf %35 : vector<128x256xf32> to vector<128x256xbf16>
    %37 = arith.truncf %20 : vector<256x128xf32> to vector<256x128xbf16>
    %cst_30 = arith.constant dense<0.000000e+00> : vector<128x128xf32>
    %38 = tpu.matmul %36, %37, %cst_30 {dimension_numbers = #tpu.dot_dimension_numbers<[1], [0], [0], [1], [0, 0, 1, 1], [], []>} : vector<128x256xbf16>, vector<256x128xbf16>, vector<128x128xf32> -> vector<128x128xf32>
    %39 = vector.broadcast %27 : vector<1x128xf32> to vector<128x128xf32>
    %40 = arith.addf %38, %39 : vector<128x128xf32>
    %c0_31 = arith.constant 0 : index
    %c0_32 = arith.constant 0 : index
    %41 = vector.load %arg14[%c0_31, %c0_32] : memref<128x128xf32, #tpu.memory_space<vmem>>, vector<128x128xf32>
    tpu.vector_store %arg14[%c0_31, %c0_32], %40 {strides = array<i32>} : memref<128x128xf32, #tpu.memory_space<vmem>>, vector<128x128xf32>,
    return
  }
  func.func @transform_0(%arg0: i32) -> (i32, i32) {
    %c0_i32 = arith.constant 0 : i32
    %c0_i32_0 = arith.constant 0 : i32
    return %arg0, %c0_i32 : i32, i32
  }
  func.func @transform_1(%arg0: i32) -> (i32, i32) {
    %c0_i32 = arith.constant 0 : i32
    %c0_i32_0 = arith.constant 0 : i32
    %c0_i32_1 = arith.constant 0 : i32
    return %c0_i32, %c0_i32_0 : i32, i32
  }
  func.func @transform_2(%arg0: i32) -> (i32, i32) {
    %c0_i32 = arith.constant 0 : i32
    %c0_i32_0 = arith.constant 0 : i32
    %c0_i32_1 = arith.constant 0 : i32
    return %c0_i32, %c0_i32_0 : i32, i32
  }
  func.func @transform_3(%arg0: i32) -> (i32, i32) {
    %c0_i32 = arith.constant 0 : i32
    %c0_i32_0 = arith.constant 0 : i32
    %c0_i32_1 = arith.constant 0 : i32
    return %c0_i32, %c0_i32_0 : i32, i32
  }
  func.func @transform_4(%arg0: i32) -> (i32, i32) {
    %c0_i32 = arith.constant 0 : i32
    %c0_i32_0 = arith.constant 0 : i32
    %c0_i32_1 = arith.constant 0 : i32
    return %c0_i32, %c0_i32_0 : i32, i32
  }
  func.func @transform_5(%arg0: i32) -> (i32, i32) {
    %c0_i32 = arith.constant 0 : i32
    %c0_i32_0 = arith.constant 0 : i32
    %c0_i32_1 = arith.constant 0 : i32
    return %c0_i32, %c0_i32_0 : i32, i32
  }
  func.func @transform_6(%arg0: i32) -> (i32, i32) {
    %c0_i32 = arith.constant 0 : i32
    %c0_i32_0 = arith.constant 0 : i32
    %c0_i32_1 = arith.constant 0 : i32
    return %c0_i32, %c0_i32_0 : i32, i32
  }
  func.func @transform_7(%arg0: i32) -> (i32, i32) {
    %c0_i32 = arith.constant 0 : i32
    %c0_i32_0 = arith.constant 0 : i32
    %c0_i32_1 = arith.constant 0 : i32
    return %c0_i32, %c0_i32_0 : i32, i32
  }
  func.func @transform_8(%arg0: i32) -> (i32, i32) {
    %c0_i32 = arith.constant 0 : i32
    %c0_i32_0 = arith.constant 0 : i32
    %c0_i32_1 = arith.constant 0 : i32
    return %c0_i32, %c0_i32_0 : i32, i32
  }
  func.func @transform_9(%arg0: i32) -> (i32, i32) {
    %c0_i32 = arith.constant 0 : i32
    %c0_i32_0 = arith.constant 0 : i32
    %c0_i32_1 = arith.constant 0 : i32
    return %c0_i32, %c0_i32_0 : i32, i32
  }
  func.func @transform_10(%arg0: i32) -> (i32, i32) {
    %c0_i32 = arith.constant 0 : i32
    %c0_i32_0 = arith.constant 0 : i32
    %c0_i32_1 = arith.constant 0 : i32
    return %c0_i32, %c0_i32_0 : i32, i32
  }
  func.func @transform_11(%arg0: i32) -> (i32, i32) {
    %c0_i32 = arith.constant 0 : i32
    %c0_i32_0 = arith.constant 0 : i32
    %c0_i32_1 = arith.constant 0 : i32
    return %c0_i32, %c0_i32_0 : i32, i32
  }
  func.func @transform_12(%arg0: i32) -> (i32, i32) {
    %c0_i32 = arith.constant 0 : i32
    %c0_i32_0 = arith.constant 0 : i32
    %c0_i32_1 = arith.constant 0 : i32
    return %c0_i32, %c0_i32_0 : i32, i32
  }
  func.func @transform_13(%arg0: i32) -> (i32, i32) {
    %c0_i32 = arith.constant 0 : i32
    %c0_i32_0 = arith.constant 0 : i32
    return %arg0, %c0_i32 : i32, i32
  }
}

</mosaic_0001>

<llo_original>
// kernel: tpu_custom_call.1
$region0: #{tpu_custom_call.1}
  #allocation0 [shape = 'u32[]', space=smem, size = 0x4, offset = 0x4, fixed_abs, tag = 'smem constant byte address 0x4 - core index']
  #allocation1 [shape = 'u32[144,128]{1,0:T(1,128)}', space=vmem, size = 0x12000, scoped, tag = 'internal scratch']
  %s0 = inlined_call_operand.hbm [shape: f32[512,128], index: 0, kind: input, shape index: {}]
  %s1 = inlined_call_operand.hbm [shape: f32[128,256], index: 1, kind: input, shape index: {}]
  %s2 = inlined_call_operand.hbm [shape: f32[128,256], index: 2, kind: input, shape index: {}]
  %s3 = inlined_call_operand.hbm [shape: f32[128,256], index: 3, kind: input, shape index: {}]
  %s4 = inlined_call_operand.vmem [shape: f32[1,256], index: 4, kind: input, shape index: {}]
  %s5 = inlined_call_operand.vmem [shape: f32[1,256], index: 5, kind: input, shape index: {}]
  %s6 = inlined_call_operand.vmem [shape: f32[1,256], index: 6, kind: input, shape index: {}]
  %s7 = inlined_call_operand.hbm [shape: f32[256,128], index: 7, kind: input, shape index: {}]
  %s8 = inlined_call_operand.hbm [shape: f32[256,128], index: 8, kind: input, shape index: {}]
  %s9 = inlined_call_operand.hbm [shape: f32[256,128], index: 9, kind: input, shape index: {}]
  %s10 = inlined_call_operand.vmem [shape: f32[1,128], index: 10, kind: input, shape index: {}]
  %s11 = inlined_call_operand.vmem [shape: f32[1,128], index: 11, kind: input, shape index: {}]
  %s12 = inlined_call_operand.vmem [shape: f32[1,128], index: 12, kind: input, shape index: {}]
  %s13 = inlined_call_operand.hbm [shape: f32[512,128], index: 13, kind: output, shape index: {}]
  %s14 = sld [smem:[#allocation0]]
  $region113: #{tpu_custom_call.1} parent=0
    _
  %s16 = ssub.s32 1, %s14
  %s17 = scalar_select 0, %s16, %s14
  $region1: #{tpu_custom_call.1} parent=0
    #allocation2 [shape = 'u8[131072]{0}', space=vmem, size = 0x20000, scoped, tag = 'input window, operand 0']
    #allocation3 [shape = 's32[2]{0}', space=sflag, size = 0x8, scoped, tag = 'scoped memory for tpu_custom_call.1']
    #allocation4 [shape = 's32[2]{0}', space=sflag, size = 0x8, scoped, tag = 'scoped memory for tpu_custom_call.1']
    #allocation5 [shape = 'u8[131072]{0}', space=vmem, size = 0x20000, scoped, tag = 'input window, operand 1, single buffered']
    #allocation6 [shape = 's32[1]{0}', space=sflag, size = 0x4, scoped, tag = 'scoped memory for tpu_custom_call.1']
    #allocation7 [shape = 'u8[131072]{0}', space=vmem, size = 0x20000, scoped, tag = 'input window, operand 2, single buffered']
    #allocation8 [shape = 'u8[131072]{0}', space=vmem, size = 0x20000, scoped, tag = 'input window, operand 3, single buffered']
    #allocation9 [shape = 's32[1]{0}', space=sflag, size = 0x4, scoped, tag = 'scoped memory for tpu_custom_call.1']
    #allocation10 [shape = 'u8[131072]{0}', space=vmem, size = 0x20000, scoped, tag = 'input window, operand 7, single buffered']
    #allocation11 [shape = 'u8[131072]{0}', space=vmem, size = 0x20000, scoped, tag = 'input window, operand 8, single buffered']
    #allocation12 [shape = 's32[1]{0}', space=sflag, size = 0x4, scoped, tag = 'scoped memory for tpu_custom_call.1']
    #allocation13 [shape = 'u8[131072]{0}', space=vmem, size = 0x20000, scoped, tag = 'input window, operand 9, single buffered']
    #allocation14 [shape = 'u8[131072]{0}', space=vmem, size = 0x20000, scoped, tag = 'output window, operand 0']
    %18 = vsyncpa [#allocation3], 0
    %s19 = scalar_lea.sflag [#allocation3], 1
    %20 = vsyncpa %s19, 0
    %21 = vsyncpa [#allocation6], 0
    %22 = vsyncpa [#allocation9], 0
    %23 = vsyncpa [#allocation12], 0
    %24 = vsyncpa [#allocation4], 0
    %s25 = scalar_lea.sflag [#allocation4], 1
    %26 = vsyncpa %s25, 0
    loop: start=0, step=1, limit=6
    $region2: #{tpu_custom_call.1} parent=1 // loop_pre_header
      _
    $region3: #{tpu_custom_call.1} parent=1 // loop_header
      %s28 = sphi 0, %s32
      %p29 = scmp.ge.s32.totalorder %s28, 6
      %s38 = sphi 0, %s40
      %s41 = sphi 0, %s38
      %s42 = sphi 0, %s41
      %s58 = sphi 0, %s42
      %s62 = sphi 0, %s62
      %s64 = sphi 0, %s62
      %s65 = sphi 0, %s64
      %s79 = sphi 0, %s65
      %s83 = sphi 0, %s83
      %s85 = sphi 0, %s83
      %s86 = sphi 0, %s85
      %s100 = sphi 0, %s86
      %s104 = sphi 0, %s104
      %s106 = sphi 0, %s104
      %s107 = sphi 0, %s106
      %s121 = sphi 0, %s107
      %s125 = sphi 0, %s125
      %s127 = sphi 0, %s125
      %s128 = sphi 0, %s127
      %s142 = sphi 0, %s128
      %s146 = sphi 0, %s146
      %s148 = sphi 0, %s146
      %s149 = sphi 0, %s148
      %s163 = sphi 0, %s149
      %s167 = sphi 0, %s167
      %s169 = sphi 0, %s167
      %s170 = sphi 0, %s169
      %s184 = sphi 0, %s170
      %s188 = sphi 0, %s188
      %s190 = sphi 0, %s188
      %s191 = sphi 0, %s190
      %s205 = sphi 0, %s191
      %s209 = sphi 0, %s209
      %s211 = sphi 0, %s209
      %s212 = sphi 0, %s211
      %s226 = sphi 0, %s212
      %s230 = sphi 0, %s230
      %s232 = sphi 0, %s230
      %s233 = sphi 0, %s232
      %s247 = sphi 0, %s233
      %s251 = sphi 0, %s251
      %s253 = sphi 0, %s251
      %s254 = sphi 0, %s253
      %s268 = sphi 0, %s254
      %s272 = sphi 0, %s272
      %s274 = sphi 0, %s272
      %s275 = sphi 0, %s274
      %s289 = sphi 0, %s275
      %s293 = sphi 0, %s293
      %s295 = sphi 0, %s293
      %s296 = sphi 0, %s295
      %s310 = sphi 0, %s296
      %s316 = sphi 0, %s318
      %s319 = sphi 0, %s316
      %s320 = sphi 0, %s319
      %s336 = sphi 0, %s320
    $region4: #{tpu_custom_call.1} parent=1 // loop_header_branch
      %31 = sbr.rel (%p29) target = $region8
    $region5: #{tpu_custom_call.1} parent=1 // loop_body
      %s33 = ssub.s32 %s28, 1
      %s34 = ssub.s32 %s28, 2
      %s35 = sadd.s32 %s28, 1
      %s36 = ssub.s32 %s28, %s35
      %p37 = scmp.eq.s32.totalorder %s36, 0
      %s39 = sadd.s32 %s38, 1
      %s40 = scalar_select %p37, %s38, %s39
      %p43 = pneg %p37
      %p44 = scmp.eq.s32.totalorder %s28, 3
      %p45 = por %p43, %p44
      %p46 = scmp.ne.s32.totalorder %s38, %s41
      %p47 = scmp.eq.s32.totalorder %s28, 0
      %p48 = por %p46, %p47
      %p49 = scmp.ne.s32.totalorder %s38, %s41
      %p50 = scmp.eq.s32.totalorder %s33, 3
      %p51 = por %p49, %p50
      %p52 = scmp.ne.s32.totalorder %s41, %s42
      %p53 = scmp.eq.s32.totalorder %s33, 0
      %p54 = por %p52, %p53
      %p55 = scmp.ne.s32.totalorder %s41, %s42
      %p56 = scmp.eq.s32.totalorder %s34, 3
      %p57 = por %p55, %p56
      %p59 = scmp.ne.s32.totalorder %s42, %s58
      %p60 = scmp.eq.s32.totalorder %s34, 0
      %p61 = por %p59, %p60
      %s63 = sadd.s32 %s62, 1
      %p66 = scmp.eq.s32.totalorder %s28, 3
      %p67 = scmp.ne.s32.totalorder %s62, %s64
      %p68 = scmp.eq.s32.totalorder %s28, 0
      %p69 = por %p67, %p68
      %p70 = scmp.ne.s32.totalorder %s62, %s64
      %p71 = scmp.eq.s32.totalorder %s33, 3
      %p72 = por %p70, %p71
      %p73 = scmp.ne.s32.totalorder %s64, %s65
      %p74 = scmp.eq.s32.totalorder %s33, 0
      %p75 = por %p73, %p74
      %p76 = scmp.ne.s32.totalorder %s64, %s65
      %p77 = scmp.eq.s32.totalorder %s34, 3
      %p78 = por %p76, %p77
      %p80 = scmp.ne.s32.totalorder %s65, %s79
      %p81 = scmp.eq.s32.totalorder %s34, 0
      %p82 = por %p80, %p81
      %s84 = sadd.s32 %s83, 1
      %p87 = scmp.eq.s32.totalorder %s28, 3
      %p88 = scmp.ne.s32.totalorder %s83, %s85
      %p89 = scmp.eq.s32.totalorder %s28, 0
      %p90 = por %p88, %p89
      %p91 = scmp.ne.s32.totalorder %s83, %s85
      %p92 = scmp.eq.s32.totalorder %s33, 3
      %p93 = por %p91, %p92
      %p94 = scmp.ne.s32.totalorder %s85, %s86
      %p95 = scmp.eq.s32.totalorder %s33, 0
      %p96 = por %p94, %p95
      %p97 = scmp.ne.s32.totalorder %s85, %s86
      %p98 = scmp.eq.s32.totalorder %s34, 3
      %p99 = por %p97, %p98
      %p101 = scmp.ne.s32.totalorder %s86, %s100
      %p102 = scmp.eq.s32.totalorder %s34, 0
      %p103 = por %p101, %p102
      %s105 = sadd.s32 %s104, 1
      %p108 = scmp.eq.s32.totalorder %s28, 3
      %p109 = scmp.ne.s32.totalorder %s104, %s106
      %p110 = scmp.eq.s32.totalorder %s28, 0
      %p111 = por %p109, %p110
      %p112 = scmp.ne.s32.totalorder %s104, %s106
      %p113 = scmp.eq.s32.totalorder %s33, 3
      %p114 = por %p112, %p113
      %p115 = scmp.ne.s32.totalorder %s106, %s107
      %p116 = scmp.eq.s32.totalorder %s33, 0
      %p117 = por %p115, %p116
      %p118 = scmp.ne.s32.totalorder %s106, %s107
      %p119 = scmp.eq.s32.totalorder %s34, 3
      %p120 = por %p118, %p119
      %p122 = scmp.ne.s32.totalorder %s107, %s121
      %p123 = scmp.eq.s32.totalorder %s34, 0
      %p124 = por %p122, %p123
      %s126 = sadd.s32 %s125, 1
      %p129 = scmp.eq.s32.totalorder %s28, 3
      %p130 = scmp.ne.s32.totalorder %s125, %s127
      %p131 = scmp.eq.s32.totalorder %s28, 0
      %p132 = por %p130, %p131
      %p133 = scmp.ne.s32.totalorder %s125, %s127
      %p134 = scmp.eq.s32.totalorder %s33, 3
      %p135 = por %p133, %p134
      %p136 = scmp.ne.s32.totalorder %s127, %s128
      %p137 = scmp.eq.s32.totalorder %s33, 0
      %p138 = por %p136, %p137
      %p139 = scmp.ne.s32.totalorder %s127, %s128
      %p140 = scmp.eq.s32.totalorder %s34, 3
      %p141 = por %p139, %p140
      %p143 = scmp.ne.s32.totalorder %s128, %s142
      %p144 = scmp.eq.s32.totalorder %s34, 0
      %p145 = por %p143, %p144
      %s147 = sadd.s32 %s146, 1
      %p150 = scmp.eq.s32.totalorder %s28, 3
      %p151 = scmp.ne.s32.totalorder %s146, %s148
      %p152 = scmp.eq.s32.totalorder %s28, 0
      %p153 = por %p151, %p152
      %p154 = scmp.ne.s32.totalorder %s146, %s148
      %p155 = scmp.eq.s32.totalorder %s33, 3
      %p156 = por %p154, %p155
      %p157 = scmp.ne.s32.totalorder %s148, %s149
      %p158 = scmp.eq.s32.totalorder %s33, 0
      %p159 = por %p157, %p158
      %p160 = scmp.ne.s32.totalorder %s148, %s149
      %p161 = scmp.eq.s32.totalorder %s34, 3
      %p162 = por %p160, %p161
      %p164 = scmp.ne.s32.totalorder %s149, %s163
      %p165 = scmp.eq.s32.totalorder %s34, 0
      %p166 = por %p164, %p165
      %s168 = sadd.s32 %s167, 1
      %p171 = scmp.eq.s32.totalorder %s28, 3
      %p172 = scmp.ne.s32.totalorder %s167, %s169
      %p173 = scmp.eq.s32.totalorder %s28, 0
      %p174 = por %p172, %p173
      %p175 = scmp.ne.s32.totalorder %s167, %s169
      %p176 = scmp.eq.s32.totalorder %s33, 3
      %p177 = por %p175, %p176
      %p178 = scmp.ne.s32.totalorder %s169, %s170
      %p179 = scmp.eq.s32.totalorder %s33, 0
      %p180 = por %p178, %p179
      %p181 = scmp.ne.s32.totalorder %s169, %s170
      %p182 = scmp.eq.s32.totalorder %s34, 3
      %p183 = por %p181, %p182
      %p185 = scmp.ne.s32.totalorder %s170, %s184
      %p186 = scmp.eq.s32.totalorder %s34, 0
      %p187 = por %p185, %p186
      %s189 = sadd.s32 %s188, 1
      %p192 = scmp.eq.s32.totalorder %s28, 3
      %p193 = scmp.ne.s32.totalorder %s188, %s190
      %p194 = scmp.eq.s32.totalorder %s28, 0
      %p195 = por %p193, %p194
      %p196 = scmp.ne.s32.totalorder %s188, %s190
      %p197 = scmp.eq.s32.totalorder %s33, 3
      %p198 = por %p196, %p197
      %p199 = scmp.ne.s32.totalorder %s190, %s191
      %p200 = scmp.eq.s32.totalorder %s33, 0
      %p201 = por %p199, %p200
      %p202 = scmp.ne.s32.totalorder %s190, %s191
      %p203 = scmp.eq.s32.totalorder %s34, 3
      %p204 = por %p202, %p203
      %p206 = scmp.ne.s32.totalorder %s191, %s205
      %p207 = scmp.eq.s32.totalorder %s34, 0
      %p208 = por %p206, %p207
      %s210 = sadd.s32 %s209, 1
      %p213 = scmp.eq.s32.totalorder %s28, 3
      %p214 = scmp.ne.s32.totalorder %s209, %s211
      %p215 = scmp.eq.s32.totalorder %s28, 0
      %p216 = por %p214, %p215
      %p217 = scmp.ne.s32.totalorder %s209, %s211
      %p218 = scmp.eq.s32.totalorder %s33, 3
      %p219 = por %p217, %p218
      %p220 = scmp.ne.s32.totalorder %s211, %s212
      %p221 = scmp.eq.s32.totalorder %s33, 0
      %p222 = por %p220, %p221
      %p223 = scmp.ne.s32.totalorder %s211, %s212
      %p224 = scmp.eq.s32.totalorder %s34, 3
      %p225 = por %p223, %p224
      %p227 = scmp.ne.s32.totalorder %s212, %s226
      %p228 = scmp.eq.s32.totalorder %s34, 0
      %p229 = por %p227, %p228
      %s231 = sadd.s32 %s230, 1
      %p234 = scmp.eq.s32.totalorder %s28, 3
      %p235 = scmp.ne.s32.totalorder %s230, %s232
      %p236 = scmp.eq.s32.totalorder %s28, 0
      %p237 = por %p235, %p236
      %p238 = scmp.ne.s32.totalorder %s230, %s232
      %p239 = scmp.eq.s32.totalorder %s33, 3
      %p240 = por %p238, %p239
      %p241 = scmp.ne.s32.totalorder %s232, %s233
      %p242 = scmp.eq.s32.totalorder %s33, 0
      %p243 = por %p241, %p242
      %p244 = scmp.ne.s32.totalorder %s232, %s233
      %p245 = scmp.eq.s32.totalorder %s34, 3
      %p246 = por %p244, %p245
      %p248 = scmp.ne.s32.totalorder %s233, %s247
      %p249 = scmp.eq.s32.totalorder %s34, 0
      %p250 = por %p248, %p249
      %s252 = sadd.s32 %s251, 1
      %p255 = scmp.eq.s32.totalorder %s28, 3
      %p256 = scmp.ne.s32.totalorder %s251, %s253
      %p257 = scmp.eq.s32.totalorder %s28, 0
      %p258 = por %p256, %p257
      %p259 = scmp.ne.s32.totalorder %s251, %s253
      %p260 = scmp.eq.s32.totalorder %s33, 3
      %p261 = por %p259, %p260
      %p262 = scmp.ne.s32.totalorder %s253, %s254
      %p263 = scmp.eq.s32.totalorder %s33, 0
      %p264 = por %p262, %p263
      %p265 = scmp.ne.s32.totalorder %s253, %s254
      %p266 = scmp.eq.s32.totalorder %s34, 3
      %p267 = por %p265, %p266
      %p269 = scmp.ne.s32.totalorder %s254, %s268
      %p270 = scmp.eq.s32.totalorder %s34, 0
      %p271 = por %p269, %p270
      %s273 = sadd.s32 %s272, 1
      %p276 = scmp.eq.s32.totalorder %s28, 3
      %p277 = scmp.ne.s32.totalorder %s272, %s274
      %p278 = scmp.eq.s32.totalorder %s28, 0
      %p279 = por %p277, %p278
      %p280 = scmp.ne.s32.totalorder %s272, %s274
      %p281 = scmp.eq.s32.totalorder %s33, 3
      %p282 = por %p280, %p281
      %p283 = scmp.ne.s32.totalorder %s274, %s275
      %p284 = scmp.eq.s32.totalorder %s33, 0
      %p285 = por %p283, %p284
      %p286 = scmp.ne.s32.totalorder %s274, %s275
      %p287 = scmp.eq.s32.totalorder %s34, 3
      %p288 = por %p286, %p287
      %p290 = scmp.ne.s32.totalorder %s275, %s289
      %p291 = scmp.eq.s32.totalorder %s34, 0
      %p292 = por %p290, %p291
      %s294 = sadd.s32 %s293, 1
      %p297 = scmp.eq.s32.totalorder %s28, 3
      %p298 = scmp.ne.s32.totalorder %s293, %s295
      %p299 = scmp.eq.s32.totalorder %s28, 0
      %p300 = por %p298, %p299
      %p301 = scmp.ne.s32.totalorder %s293, %s295
      %p302 = scmp.eq.s32.totalorder %s33, 3
      %p303 = por %p301, %p302
      %p304 = scmp.ne.s32.totalorder %s295, %s296
      %p305 = scmp.eq.s32.totalorder %s33, 0
      %p306 = por %p304, %p305
      %p307 = scmp.ne.s32.totalorder %s295, %s296
      %p308 = scmp.eq.s32.totalorder %s34, 3
      %p309 = por %p307, %p308
      %p311 = scmp.ne.s32.totalorder %s296, %s310
      %p312 = scmp.eq.s32.totalorder %s34, 0
      %p313 = por %p311, %p312
      %s314 = ssub.s32 %s28, %s35
      %p315 = scmp.eq.s32.totalorder %s314, 0
      %s317 = sadd.s32 %s316, 1
      %s318 = scalar_select %p315, %s316, %s317
      %p321 = pneg %p315
      %p322 = scmp.eq.s32.totalorder %s28, 3
      %p323 = por %p321, %p322
      %p324 = scmp.ne.s32.totalorder %s316, %s319
      %p325 = scmp.eq.s32.totalorder %s28, 0
      %p326 = por %p324, %p325
      %p327 = scmp.ne.s32.totalorder %s316, %s319
      %p328 = scmp.eq.s32.totalorder %s33, 3
      %p329 = por %p327, %p328
      %p330 = scmp.ne.s32.totalorder %s319, %s320
      %p331 = scmp.eq.s32.totalorder %s33, 0
      %p332 = por %p330, %p331
      %p333 = scmp.ne.s32.totalorder %s319, %s320
      %p334 = scmp.eq.s32.totalorder %s34, 3
      %p335 = por %p333, %p334
      %p337 = scmp.ne.s32.totalorder %s320, %s336
      %p338 = scmp.eq.s32.totalorder %s34, 0
      %p339 = por %p337, %p338
      %p340 = scmp.le.s32.totalorder 1, %s28
      %p341 = scmp.lt.s32.totalorder %s28, 5
      %p342 = pnand %p340, %p341
      %p343 = pneg %p342
      // Predicated region
      $region9: #{tpu_custom_call.1} parent=5 // pred_check
        _
      $region10: #{tpu_custom_call.1} parent=5 // pred_check_branch
        %345 = sbr.rel (%p342) target = $region12
      $region11: #{tpu_custom_call.1} parent=5 // pred_region
        %s346 = ssub.s32 %s28, 1
        // Predicated region
        $region13: #{tpu_custom_call.1} parent=11 // pred_check
          %p347 = pneg %p75
        $region14: #{tpu_custom_call.1} parent=11 // pred_check_branch
          %349 = sbr.rel (%p347) target = $region16
        $region15: #{tpu_custom_call.1} parent=11 // pred_region
          %s351 = ssub.s32 4096, 4096
          %352 = vsyncadd [#allocation6], %s351
          %s353 = sshll.u32 [#allocation5], 4
          %s354 = int_to_ptr.vmem [resolvable:$true] %s353
          %359 = dma.hbm_to_vmem [thread:$0]  %s1, 4096, %s354, [#allocation6], 256, 256, 16
        $region16: #{tpu_custom_call.1} parent=11 // pred_fallthru
          _
        // Predicated region
        $region17: #{tpu_custom_call.1} parent=11 // pred_check
          %p360 = pneg %p96
        $region18: #{tpu_custom_call.1} parent=11 // pred_check_branch
          %362 = sbr.rel (%p360) target = $region20
        $region19: #{tpu_custom_call.1} parent=11 // pred_region
          %s364 = ssub.s32 4096, 4096
          %365 = vsyncadd [#allocation6], %s364
          %s366 = sshll.u32 [#allocation7], 4
          %s367 = int_to_ptr.vmem [resolvable:$true] %s366
          %372 = dma.hbm_to_vmem [thread:$0]  %s2, 4096, %s367, [#allocation6], 256, 256, 16
        $region20: #{tpu_custom_call.1} parent=11 // pred_fallthru
          _
        // Predicated region
        $region21: #{tpu_custom_call.1} parent=11 // pred_check
          %p373 = pneg %p117
        $region22: #{tpu_custom_call.1} parent=11 // pred_check_branch
          %375 = sbr.rel (%p373) target = $region24
        $region23: #{tpu_custom_call.1} parent=11 // pred_region
          %s377 = ssub.s32 4096, 4096
          %378 = vsyncadd [#allocation9], %s377
          %s379 = sshll.u32 [#allocation8], 4
          %s380 = int_to_ptr.vmem [resolvable:$true] %s379
          %385 = dma.hbm_to_vmem [thread:$0]  %s3, 4096, %s380, [#allocation9], 256, 256, 16
        $region24: #{tpu_custom_call.1} parent=11 // pred_fallthru
          _
        // Predicated region
        $region25: #{tpu_custom_call.1} parent=11 // pred_check
          %p386 = pneg %p138
        $region26: #{tpu_custom_call.1} parent=11 // pred_check_branch
          %388 = sbr.rel (%p386) target = $region28
        $region27: #{tpu_custom_call.1} parent=11 // pred_region
          _
        $region28: #{tpu_custom_call.1} parent=11 // pred_fallthru
          _
        // Predicated region
        $region29: #{tpu_custom_call.1} parent=11 // pred_check
          %p389 = pneg %p159
        $region30: #{tpu_custom_call.1} parent=11 // pred_check_branch
          %391 = sbr.rel (%p389) target = $region32
        $region31: #{tpu_custom_call.1} parent=11 // pred_region
          _
        $region32: #{tpu_custom_call.1} parent=11 // pred_fallthru
          _
        // Predicated region
        $region33: #{tpu_custom_call.1} parent=11 // pred_check
          %p392 = pneg %p180
        $region34: #{tpu_custom_call.1} parent=11 // pred_check_branch
          %394 = sbr.rel (%p392) target = $region36
        $region35: #{tpu_custom_call.1} parent=11 // pred_region
          _
        $region36: #{tpu_custom_call.1} parent=11 // pred_fallthru
          _
        // Predicated region
        $region37: #{tpu_custom_call.1} parent=11 // pred_check
          %p395 = pneg %p201
        $region38: #{tpu_custom_call.1} parent=11 // pred_check_branch
          %397 = sbr.rel (%p395) target = $region40
        $region39: #{tpu_custom_call.1} parent=11 // pred_region
          %s399 = ssub.s32 4096, 4096
          %400 = vsyncadd [#allocation9], %s399
          %s401 = sshll.u32 [#allocation10], 4
          %s402 = int_to_ptr.vmem [resolvable:$true] %s401
          %407 = dma.hbm_to_vmem [thread:$0]  %s7, 4096, %s402, [#allocation9], 128, 128, 8
        $region40: #{tpu_custom_call.1} parent=11 // pred_fallthru
          _
        // Predicated region
        $region41: #{tpu_custom_call.1} parent=11 // pred_check
          %p408 = pneg %p222
        $region42: #{tpu_custom_call.1} parent=11 // pred_check_branch
          %410 = sbr.rel (%p408) target = $region44
        $region43: #{tpu_custom_call.1} parent=11 // pred_region
          %s412 = ssub.s32 4096, 4096
          %413 = vsyncadd [#allocation12], %s412
          %s414 = sshll.u32 [#allocation11], 4
          %s415 = int_to_ptr.vmem [resolvable:$true] %s414
          %420 = dma.hbm_to_vmem [thread:$0]  %s8, 4096, %s415, [#allocation12], 128, 128, 8
        $region44: #{tpu_custom_call.1} parent=11 // pred_fallthru
          _
        // Predicated region
        $region45: #{tpu_custom_call.1} parent=11 // pred_check
          %p421 = pneg %p243
        $region46: #{tpu_custom_call.1} parent=11 // pred_check_branch
          %423 = sbr.rel (%p421) target = $region48
        $region47: #{tpu_custom_call.1} parent=11 // pred_region
          %s425 = ssub.s32 4096, 4096
          %426 = vsyncadd [#allocation12], %s425
          %s427 = sshll.u32 [#allocation13], 4
          %s428 = int_to_ptr.vmem [resolvable:$true] %s427
          %433 = dma.hbm_to_vmem [thread:$0]  %s9, 4096, %s428, [#allocation12], 128, 128, 8
        $region48: #{tpu_custom_call.1} parent=11 // pred_fallthru
          _
        // Predicated region
        $region49: #{tpu_custom_call.1} parent=11 // pred_check
          %p434 = pneg %p264
        $region50: #{tpu_custom_call.1} parent=11 // pred_check_branch
          %436 = sbr.rel (%p434) target = $region52
        $region51: #{tpu_custom_call.1} parent=11 // pred_region
          _
        $region52: #{tpu_custom_call.1} parent=11 // pred_fallthru
          _
        // Predicated region
        $region53: #{tpu_custom_call.1} parent=11 // pred_check
          %p437 = pneg %p285
        $region54: #{tpu_custom_call.1} parent=11 // pred_check_branch
          %439 = sbr.rel (%p437) target = $region56
        $region55: #{tpu_custom_call.1} parent=11 // pred_region
          _
        $region56: #{tpu_custom_call.1} parent=11 // pred_fallthru
          _
        // Predicated region
        $region57: #{tpu_custom_call.1} parent=11 // pred_check
          %p440 = pneg %p306
        $region58: #{tpu_custom_call.1} parent=11 // pred_check_branch
          %442 = sbr.rel (%p440) target = $region60
        $region59: #{tpu_custom_call.1} parent=11 // pred_region
          _
        $region60: #{tpu_custom_call.1} parent=11 // pred_fallthru
          _
      $region12: #{tpu_custom_call.1} parent=5 // pred_fallthru
        _
      %p443 = scmp.lt.s32.totalorder %s28, 4
      // Predicated region
      $region61: #{tpu_custom_call.1} parent=5 // pred_check
        %p444 = pneg %p443
      $region62: #{tpu_custom_call.1} parent=5 // pred_check_branch
        %446 = sbr.rel (%p444) target = $region64
      $region63: #{tpu_custom_call.1} parent=5 // pred_region
        // Predicated region
        $region65: #{tpu_custom_call.1} parent=63 // pred_check
          %p447 = pneg %p48
        $region66: #{tpu_custom_call.1} parent=63 // pred_check_branch
          %449 = sbr.rel (%p447) target = $region68
        $region67: #{tpu_custom_call.1} parent=63 // pred_region
          %s450 = sand.u32 %s38, 1
          %s451 = scalar_lea.sflag [#allocation3], %s450
          %s452 = sand.u32 %s38, 1
          %s453 = smul.addr %s452, 128
          %s454 = scalar_lea.vmem [#allocation2], %s453
          %s455 = smul.u32 16, %s28
          %s457 = ssub.s32 2048, 2048
          %458 = vsyncadd %s451, %s457
          %s459 = smul.addr %s455, 128
          %s460 = scalar_lea.hbm %s0, %s459
          %s461 = sshll.u32 %s454, 4
          %s462 = int_to_ptr.vmem [resolvable:$true] %s461
          %467 = dma.hbm_to_vmem [thread:$0]  %s460, 2048, %s462, %s451, 128, 128, 8
        $region68: #{tpu_custom_call.1} parent=63 // pred_fallthru
          _
      $region64: #{tpu_custom_call.1} parent=5 // pred_fallthru
        _
      %p468 = scmp.le.s32.totalorder 1, %s28
      %p469 = scmp.lt.s32.totalorder %s28, 5
      %p470 = pnand %p468, %p469
      %p471 = pneg %p470
      // Predicated region
      $region69: #{tpu_custom_call.1} parent=5 // pred_check
        _
      $region70: #{tpu_custom_call.1} parent=5 // pred_check_branch
        %473 = sbr.rel (%p470) target = $region72
      $region71: #{tpu_custom_call.1} parent=5 // pred_region
        %s474 = ssub.s32 %s28, 1
        %s475 = sand.u32 %s41, 1
        %s476 = scalar_lea.sflag [#allocation3], %s475
        %s477 = sand.u32 %s41, 1
        %s478 = smul.addr %s477, 128
        %s479 = scalar_lea.vmem [#allocation2], %s478
        // Predicated region
        $region73: #{tpu_custom_call.1} parent=71 // pred_check
          %p480 = pneg %p54
        $region74: #{tpu_custom_call.1} parent=71 // pred_check_branch
          %482 = sbr.rel (%p480) target = $region76
        $region75: #{tpu_custom_call.1} parent=71 // pred_region
          %483 = dma.done %s476, 2048
        $region76: #{tpu_custom_call.1} parent=71 // pred_fallthru
          _
        // Predicated region
        $region77: #{tpu_custom_call.1} parent=71 // pred_check
          %p484 = pneg %p75
        $region78: #{tpu_custom_call.1} parent=71 // pred_check_branch
          %486 = sbr.rel (%p484) target = $region80
        $region79: #{tpu_custom_call.1} parent=71 // pred_region
          %487 = dma.done [#allocation6], 4096
        $region80: #{tpu_custom_call.1} parent=71 // pred_fallthru
          _
        // Predicated region
        $region81: #{tpu_custom_call.1} parent=71 // pred_check
          %p488 = pneg %p96
        $region82: #{tpu_custom_call.1} parent=71 // pred_check_branch
          %490 = sbr.rel (%p488) target = $region84
        $region83: #{tpu_custom_call.1} parent=71 // pred_region
          %491 = dma.done [#allocation6], 4096
        $region84: #{tpu_custom_call.1} parent=71 // pred_fallthru
          _
        // Predicated region
        $region85: #{tpu_custom_call.1} parent=71 // pred_check
          %p492 = pneg %p117
        $region86: #{tpu_custom_call.1} parent=71 // pred_check_branch
          %494 = sbr.rel (%p492) target = $region88
        $region87: #{tpu_custom_call.1} parent=71 // pred_region
          %495 = dma.done [#allocation9], 4096
        $region88: #{tpu_custom_call.1} parent=71 // pred_fallthru
          _
        // Predicated region
        $region89: #{tpu_custom_call.1} parent=71 // pred_check
          %p496 = pneg %p201
        $region90: #{tpu_custom_call.1} parent=71 // pred_check_branch
          %498 = sbr.rel (%p496) target = $region92
        $region91: #{tpu_custom_call.1} parent=71 // pred_region
          %499 = dma.done [#allocation9], 4096
        $region92: #{tpu_custom_call.1} parent=71 // pred_fallthru
          _
        // Predicated region
        $region93: #{tpu_custom_call.1} parent=71 // pred_check
          %p500 = pneg %p222
        $region94: #{tpu_custom_call.1} parent=71 // pred_check_branch
          %502 = sbr.rel (%p500) target = $region96
        $region95: #{tpu_custom_call.1} parent=71 // pred_region
          %503 = dma.done [#allocation12], 4096
        $region96: #{tpu_custom_call.1} parent=71 // pred_fallthru
          _
        // Predicated region
        $region97: #{tpu_custom_call.1} parent=71 // pred_check
          %p504 = pneg %p243
        $region98: #{tpu_custom_call.1} parent=71 // pred_check_branch
          %506 = sbr.rel (%p504) target = $region100
        $region99: #{tpu_custom_call.1} parent=71 // pred_region
          %507 = dma.done [#allocation12], 4096
        $region100: #{tpu_custom_call.1} parent=71 // pred_fallthru
          _
        %s508 = sand.u32 %s41, 1
        %s509 = scalar_lea.sflag [#allocation3], %s508
        %s510 = sand.u32 %s41, 1
        %s511 = smul.addr %s510, 128
        %s512 = scalar_lea.vmem [#allocation2], %s511
        %p513 = pneg %p54
        %p514 = pneg %p51
        %p515 = pneg %p75
        %p516 = pneg %p72
        %p517 = pneg %p96
        %p518 = pneg %p93
        %p519 = pneg %p117
        %p520 = pneg %p114
        %p521 = pneg %p138
        %p522 = pneg %p135
        %p523 = pneg %p159
        %p524 = pneg %p156
        %p525 = pneg %p180
        %p526 = pneg %p177
        %p527 = pneg %p201
        %p528 = pneg %p198
        %p529 = pneg %p222
        %p530 = pneg %p219
        %p531 = pneg %p243
        %p532 = pneg %p240
        %p533 = pneg %p264
        %p534 = pneg %p261
        %p535 = pneg %p285
        %p536 = pneg %p282
        %p537 = pneg %p306
        %p538 = pneg %p303
        %p539 = pneg %p332
        %p540 = pneg %p329
        %s541 = sand.u32 %s319, 1
        %s542 = scalar_lea.sflag [#allocation4], %s541
        %s543 = sand.u32 %s319, 1
        %s544 = smul.addr %s543, 128
        %s545 = scalar_lea.vmem [#allocation14], %s544
        %s546 = smul.u32 16, %s33
        %s547 = smul.u32 16, %s33
        %v549 = vld [vmem:[#allocation5] sm:$0xff]
        %v550 = vld [vmem:[#allocation5 + $0x8] sm:$0xff]
        %v551 = vld [vmem:[#allocation5 + $0x10] sm:$0xff]
        %v552 = vld [vmem:[#allocation5 + $0x18] sm:$0xff]
        %v553 = vld [vmem:[#allocation5 + $0x20] sm:$0xff]
        %v554 = vld [vmem:[#allocation5 + $0x28] sm:$0xff]
        %v555 = vld [vmem:[#allocation5 + $0x30] sm:$0xff]
        %v556 = vld [vmem:[#allocation5 + $0x38] sm:$0xff]
        %v557 = vld [vmem:[#allocation5 + $0x40] sm:$0xff]
        %v558 = vld [vmem:[#allocation5 + $0x48] sm:$0xff]
        %v559 = vld [vmem:[#allocation5 + $0x50] sm:$0xff]
        %v560 = vld [vmem:[#allocation5 + $0x58] sm:$0xff]
        %v561 = vld [vmem:[#allocation5 + $0x60] sm:$0xff]
        %v562 = vld [vmem:[#allocation5 + $0x68] sm:$0xff]
        %v563 = vld [vmem:[#allocation5 + $0x70] sm:$0xff]
        %v564 = vld [vmem:[#allocation5 + $0x78] sm:$0xff]
        %v565 = vld [vmem:[#allocation5 + $0x80] sm:$0xff]
        %v566 = vld [vmem:[#allocation5 + $0x88] sm:$0xff]
        %v567 = vld [vmem:[#allocation5 + $0x90] sm:$0xff]
        %v568 = vld [vmem:[#allocation5 + $0x98] sm:$0xff]
        %v569 = vld [vmem:[#allocation5 + $0xa0] sm:$0xff]
        %v570 = vld [vmem:[#allocation5 + $0xa8] sm:$0xff]
        %v571 = vld [vmem:[#allocation5 + $0xb0] sm:$0xff]
        %v572 = vld [vmem:[#allocation5 + $0xb8] sm:$0xff]
        %v573 = vld [vmem:[#allocation5 + $0xc0] sm:$0xff]
        %v574 = vld [vmem:[#allocation5 + $0xc8] sm:$0xff]
        %v575 = vld [vmem:[#allocation5 + $0xd0] sm:$0xff]
        %v576 = vld [vmem:[#allocation5 + $0xd8] sm:$0xff]
        %v577 = vld [vmem:[#allocation5 + $0xe0] sm:$0xff]
        %v578 = vld [vmem:[#allocation5 + $0xe8] sm:$0xff]
        %v579 = vld [vmem:[#allocation5 + $0xf0] sm:$0xff]
        %v580 = vld [vmem:[#allocation5 + $0xf8] sm:$0xff]
        %v581 = vld [vmem:[#allocation7] sm:$0xff]
        %v582 = vld [vmem:[#allocation7 + $0x8] sm:$0xff]
        %v583 = vld [vmem:[#allocation7 + $0x10] sm:$0xff]
        %v584 = vld [vmem:[#allocation7 + $0x18] sm:$0xff]
        %v585 = vld [vmem:[#allocation7 + $0x20] sm:$0xff]
        %v586 = vld [vmem:[#allocation7 + $0x28] sm:$0xff]
        %v587 = vld [vmem:[#allocation7 + $0x30] sm:$0xff]
        %v588 = vld [vmem:[#allocation7 + $0x38] sm:$0xff]
        %v589 = vld [vmem:[#allocation7 + $0x40] sm:$0xff]
        %v590 = vld [vmem:[#allocation7 + $0x48] sm:$0xff]
        %v591 = vld [vmem:[#allocation7 + $0x50] sm:$0xff]
        %v592 = vld [vmem:[#allocation7 + $0x58] sm:$0xff]
        %v593 = vld [vmem:[#allocation7 + $0x60] sm:$0xff]
        %v594 = vld [vmem:[#allocation7 + $0x68] sm:$0xff]
        %v595 = vld [vmem:[#allocation7 + $0x70] sm:$0xff]
        %v596 = vld [vmem:[#allocation7 + $0x78] sm:$0xff]
        %v597 = vld [vmem:[#allocation7 + $0x80] sm:$0xff]
        %v598 = vld [vmem:[#allocation7 + $0x88] sm:$0xff]
        %v599 = vld [vmem:[#allocation7 + $0x90] sm:$0xff]
        %v600 = vld [vmem:[#allocation7 + $0x98] sm:$0xff]
        %v601 = vld [vmem:[#allocation7 + $0xa0] sm:$0xff]
        %v602 = vld [vmem:[#allocation7 + $0xa8] sm:$0xff]
        %v603 = vld [vmem:[#allocation7 + $0xb0] sm:$0xff]
        %v604 = vld [vmem:[#allocation7 + $0xb8] sm:$0xff]
        %v605 = vld [vmem:[#allocation7 + $0xc0] sm:$0xff]
        %v606 = vld [vmem:[#allocation7 + $0xc8] sm:$0xff]
        %v607 = vld [vmem:[#allocation7 + $0xd0] sm:$0xff]
        %v608 = vld [vmem:[#allocation7 + $0xd8] sm:$0xff]
        %v609 = vld [vmem:[#allocation7 + $0xe0] sm:$0xff]
        %v610 = vld [vmem:[#allocation7 + $0xe8] sm:$0xff]
        %v611 = vld [vmem:[#allocation7 + $0xf0] sm:$0xff]
        %v612 = vld [vmem:[#allocation7 + $0xf8] sm:$0xff]
        %v613 = vmax.f32 %v581, 1e-06
        %v614 = vmax.f32 %v582, 1e-06
        %v615 = vmax.f32 %v583, 1e-06
        %v616 = vmax.f32 %v584, 1e-06
        %v617 = vmax.f32 %v585, 1e-06
        %v618 = vmax.f32 %v586, 1e-06
        %v619 = vmax.f32 %v587, 1e-06
        %v620 = vmax.f32 %v588, 1e-06
        %v621 = vmax.f32 %v589, 1e-06
        %v622 = vmax.f32 %v590, 1e-06
        %v623 = vmax.f32 %v591, 1e-06
        %v624 = vmax.f32 %v592, 1e-06
        %v625 = vmax.f32 %v593, 1e-06
        %v626 = vmax.f32 %v594, 1e-06
        %v627 = vmax.f32 %v595, 1e-06
        %v628 = vmax.f32 %v596, 1e-06
        %v629 = vmax.f32 %v597, 1e-06
        %v630 = vmax.f32 %v598, 1e-06
        %v631 = vmax.f32 %v599, 1e-06
        %v632 = vmax.f32 %v600, 1e-06
        %v633 = vmax.f32 %v601, 1e-06
        %v634 = vmax.f32 %v602, 1e-06
        %v635 = vmax.f32 %v603, 1e-06
        %v636 = vmax.f32 %v604, 1e-06
        %v637 = vmax.f32 %v605, 1e-06
        %v638 = vmax.f32 %v606, 1e-06
        %v639 = vmax.f32 %v607, 1e-06
        %v640 = vmax.f32 %v608, 1e-06
        %v641 = vmax.f32 %v609, 1e-06
        %v642 = vmax.f32 %v610, 1e-06
        %v643 = vmax.f32 %v611, 1e-06
        %v644 = vmax.f32 %v612, 1e-06
        %v645 = vld [vmem:[#allocation8] sm:$0xff]
        %v646 = vld [vmem:[#allocation8 + $0x8] sm:$0xff]
        %v647 = vld [vmem:[#allocation8 + $0x10] sm:$0xff]
        %v648 = vld [vmem:[#allocation8 + $0x18] sm:$0xff]
        %v649 = vld [vmem:[#allocation8 + $0x20] sm:$0xff]
        %v650 = vld [vmem:[#allocation8 + $0x28] sm:$0xff]
        %v651 = vld [vmem:[#allocation8 + $0x30] sm:$0xff]
        %v652 = vld [vmem:[#allocation8 + $0x38] sm:$0xff]
        %v653 = vld [vmem:[#allocation8 + $0x40] sm:$0xff]
        %v654 = vld [vmem:[#allocation8 + $0x48] sm:$0xff]
        %v655 = vld [vmem:[#allocation8 + $0x50] sm:$0xff]
        %v656 = vld [vmem:[#allocation8 + $0x58] sm:$0xff]
        %v657 = vld [vmem:[#allocation8 + $0x60] sm:$0xff]
        %v658 = vld [vmem:[#allocation8 + $0x68] sm:$0xff]
        %v659 = vld [vmem:[#allocation8 + $0x70] sm:$0xff]
        %v660 = vld [vmem:[#allocation8 + $0x78] sm:$0xff]
        %v661 = vld [vmem:[#allocation8 + $0x80] sm:$0xff]
        %v662 = vld [vmem:[#allocation8 + $0x88] sm:$0xff]
        %v663 = vld [vmem:[#allocation8 + $0x90] sm:$0xff]
        %v664 = vld [vmem:[#allocation8 + $0x98] sm:$0xff]
        %v665 = vld [vmem:[#allocation8 + $0xa0] sm:$0xff]
        %v666 = vld [vmem:[#allocation8 + $0xa8] sm:$0xff]
        %v667 = vld [vmem:[#allocation8 + $0xb0] sm:$0xff]
        %v668 = vld [vmem:[#allocation8 + $0xb8] sm:$0xff]
        %v669 = vld [vmem:[#allocation8 + $0xc0] sm:$0xff]
        %v670 = vld [vmem:[#allocation8 + $0xc8] sm:$0xff]
        %v671 = vld [vmem:[#allocation8 + $0xd0] sm:$0xff]
        %v672 = vld [vmem:[#allocation8 + $0xd8] sm:$0xff]
        %v673 = vld [vmem:[#allocation8 + $0xe0] sm:$0xff]
        %v674 = vld [vmem:[#allocation8 + $0xe8] sm:$0xff]
        %v675 = vld [vmem:[#allocation8 + $0xf0] sm:$0xff]
        %v676 = vld [vmem:[#allocation8 + $0xf8] sm:$0xff]
        %v677 = vmul.f32 %v613, %v645
        %v678 = vmul.f32 %v614, %v646
        %v679 = vmul.f32 %v615, %v647
        %v680 = vmul.f32 %v616, %v648
        %v681 = vmul.f32 %v617, %v649
        %v682 = vmul.f32 %v618, %v650
        %v683 = vmul.f32 %v619, %v651
        %v684 = vmul.f32 %v620, %v652
        %v685 = vmul.f32 %v621, %v653
        %v686 = vmul.f32 %v622, %v654
        %v687 = vmul.f32 %v623, %v655
        %v688 = vmul.f32 %v624, %v656
        %v689 = vmul.f32 %v625, %v657
        %v690 = vmul.f32 %v626, %v658
        %v691 = vmul.f32 %v627, %v659
        %v692 = vmul.f32 %v628, %v660
        %v693 = vmul.f32 %v629, %v661
        %v694 = vmul.f32 %v630, %v662
        %v695 = vmul.f32 %v631, %v663
        %v696 = vmul.f32 %v632, %v664
        %v697 = vmul.f32 %v633, %v665
        %v698 = vmul.f32 %v634, %v666
        %v699 = vmul.f32 %v635, %v667
        %v700 = vmul.f32 %v636, %v668
        %v701 = vmul.f32 %v637, %v669
        %v702 = vmul.f32 %v638, %v670
        %v703 = vmul.f32 %v639, %v671
        %v704 = vmul.f32 %v640, %v672
        %v705 = vmul.f32 %v641, %v673
        %v706 = vmul.f32 %v642, %v674
        %v707 = vmul.f32 %v643, %v675
        %v708 = vmul.f32 %v644, %v676
        %v709 = vadd.f32 %v549, %v677
        %v710 = vadd.f32 %v550, %v678
        %v711 = vadd.f32 %v551, %v679
        %v712 = vadd.f32 %v552, %v680
        %v713 = vadd.f32 %v553, %v681
        %v714 = vadd.f32 %v554, %v682
        %v715 = vadd.f32 %v555, %v683
        %v716 = vadd.f32 %v556, %v684
        %v717 = vadd.f32 %v557, %v685
        %v718 = vadd.f32 %v558, %v686
        %v719 = vadd.f32 %v559, %v687
        %v720 = vadd.f32 %v560, %v688
        %v721 = vadd.f32 %v561, %v689
        %v722 = vadd.f32 %v562, %v690
        %v723 = vadd.f32 %v563, %v691
        %v724 = vadd.f32 %v564, %v692
        %v725 = vadd.f32 %v565, %v693
        %v726 = vadd.f32 %v566, %v694
        %v727 = vadd.f32 %v567, %v695
        %v728 = vadd.f32 %v568, %v696
        %v729 = vadd.f32 %v569, %v697
        %v730 = vadd.f32 %v570, %v698
        %v731 = vadd.f32 %v571, %v699
        %v732 = vadd.f32 %v572, %v700
        %v733 = vadd.f32 %v573, %v701
        %v734 = vadd.f32 %v574, %v702
        %v735 = vadd.f32 %v575, %v703
        %v736 = vadd.f32 %v576, %v704
        %v737 = vadd.f32 %v577, %v705
        %v738 = vadd.f32 %v578, %v706
        %v739 = vadd.f32 %v579, %v707
        %v740 = vadd.f32 %v580, %v708
        %v741 = vld [vmem:[%s4] sm:$0x3]
        %v742 = vld [vmem:[%s5] sm:$0x3]
        %v743 = vmax.f32 %v742, 1e-06
        %v744 = vld [vmem:[%s6] sm:$0x3]
        %v745 = vmul.f32 %v743, %v744
        %v746 = vadd.f32 %v741, %v745
        %v747 = vld [vmem:[#allocation10] sm:$0xff]
        %v748 = vld [vmem:[#allocation10 + $0x8] sm:$0xff]
        %v749 = vld [vmem:[#allocation10 + $0x10] sm:$0xff]
        %v750 = vld [vmem:[#allocation10 + $0x18] sm:$0xff]
        %v751 = vld [vmem:[#allocation10 + $0x20] sm:$0xff]
        %v752 = vld [vmem:[#allocation10 + $0x28] sm:$0xff]
        %v753 = vld [vmem:[#allocation10 + $0x30] sm:$0xff]
        %v754 = vld [vmem:[#allocation10 + $0x38] sm:$0xff]
        %v755 = vld [vmem:[#allocation10 + $0x40] sm:$0xff]
        %v756 = vld [vmem:[#allocation10 + $0x48] sm:$0xff]
        %v757 = vld [vmem:[#allocation10 + $0x50] sm:$0xff]
        %v758 = vld [vmem:[#allocation10 + $0x58] sm:$0xff]
        %v759 = vld [vmem:[#allocation10 + $0x60] sm:$0xff]
        %v760 = vld [vmem:[#allocation10 + $0x68] sm:$0xff]
        %v761 = vld [vmem:[#allocation10 + $0x70] sm:$0xff]
        %v762 = vld [vmem:[#allocation10 + $0x78] sm:$0xff]
        %v763 = vld [vmem:[#allocation10 + $0x80] sm:$0xff]
        %v764 = vld [vmem:[#allocation10 + $0x88] sm:$0xff]
        %v765 = vld [vmem:[#allocation10 + $0x90] sm:$0xff]
        %v766 = vld [vmem:[#allocation10 + $0x98] sm:$0xff]
        %v767 = vld [vmem:[#allocation10 + $0xa0] sm:$0xff]
        %v768 = vld [vmem:[#allocation10 + $0xa8] sm:$0xff]
        %v769 = vld [vmem:[#allocation10 + $0xb0] sm:$0xff]
        %v770 = vld [vmem:[#allocation10 + $0xb8] sm:$0xff]
        %v771 = vld [vmem:[#allocation10 + $0xc0] sm:$0xff]
        %v772 = vld [vmem:[#allocation10 + $0xc8] sm:$0xff]
        %v773 = vld [vmem:[#allocation10 + $0xd0] sm:$0xff]
        %v774 = vld [vmem:[#allocation10 + $0xd8] sm:$0xff]
        %v775 = vld [vmem:[#allocation10 + $0xe0] sm:$0xff]
        %v776 = vld [vmem:[#allocation10 + $0xe8] sm:$0xff]
        %v777 = vld [vmem:[#allocation10 + $0xf0] sm:$0xff]
        %v778 = vld [vmem:[#allocation10 + $0xf8] sm:$0xff]
        %v779 = vld [vmem:[#allocation11] sm:$0xff]
        %v780 = vld [vmem:[#allocation11 + $0x8] sm:$0xff]
        %v781 = vld [vmem:[#allocation11 + $0x10] sm:$0xff]
        %v782 = vld [vmem:[#allocation11 + $0x18] sm:$0xff]
        %v783 = vld [vmem:[#allocation11 + $0x20] sm:$0xff]
        %v784 = vld [vmem:[#allocation11 + $0x28] sm:$0xff]
        %v785 = vld [vmem:[#allocation11 + $0x30] sm:$0xff]
        %v786 = vld [vmem:[#allocation11 + $0x38] sm:$0xff]
        %v787 = vld [vmem:[#allocation11 + $0x40] sm:$0xff]
        %v788 = vld [vmem:[#allocation11 + $0x48] sm:$0xff]
        %v789 = vld [vmem:[#allocation11 + $0x50] sm:$0xff]
        %v790 = vld [vmem:[#allocation11 + $0x58] sm:$0xff]
        %v791 = vld [vmem:[#allocation11 + $0x60] sm:$0xff]
        %v792 = vld [vmem:[#allocation11 + $0x68] sm:$0xff]
        %v793 = vld [vmem:[#allocation11 + $0x70] sm:$0xff]
        %v794 = vld [vmem:[#allocation11 + $0x78] sm:$0xff]
        %v795 = vld [vmem:[#allocation11 + $0x80] sm:$0xff]
        %v796 = vld [vmem:[#allocation11 + $0x88] sm:$0xff]
        %v797 = vld [vmem:[#allocation11 + $0x90] sm:$0xff]
        %v798 = vld [vmem:[#allocation11 + $0x98] sm:$0xff]
        %v799 = vld [vmem:[#allocation11 + $0xa0] sm:$0xff]
        %v800 = vld [vmem:[#allocation11 + $0xa8] sm:$0xff]
        %v801 = vld [vmem:[#allocation11 + $0xb0] sm:$0xff]
        %v802 = vld [vmem:[#allocation11 + $0xb8] sm:$0xff]
        %v803 = vld [vmem:[#allocation11 + $0xc0] sm:$0xff]
        %v804 = vld [vmem:[#allocation11 + $0xc8] sm:$0xff]
        %v805 = vld [vmem:[#allocation11 + $0xd0] sm:$0xff]
        %v806 = vld [vmem:[#allocation11 + $0xd8] sm:$0xff]
        %v807 = vld [vmem:[#allocation11 + $0xe0] sm:$0xff]
        %v808 = vld [vmem:[#allocation11 + $0xe8] sm:$0xff]
        %v809 = vld [vmem:[#allocation11 + $0xf0] sm:$0xff]
        %v810 = vld [vmem:[#allocation11 + $0xf8] sm:$0xff]
        %v811 = vmax.f32 %v779, 1e-06
        %v812 = vmax.f32 %v780, 1e-06
        %v813 = vmax.f32 %v781, 1e-06
        %v814 = vmax.f32 %v782, 1e-06
        %v815 = vmax.f32 %v783, 1e-06
        %v816 = vmax.f32 %v784, 1e-06
        %v817 = vmax.f32 %v785, 1e-06
        %v818 = vmax.f32 %v786, 1e-06
        %v819 = vmax.f32 %v787, 1e-06
        %v820 = vmax.f32 %v788, 1e-06
        %v821 = vmax.f32 %v789, 1e-06
        %v822 = vmax.f32 %v790, 1e-06
        %v823 = vmax.f32 %v791, 1e-06
        %v824 = vmax.f32 %v792, 1e-06
        %v825 = vmax.f32 %v793, 1e-06
        %v826 = vmax.f32 %v794, 1e-06
        %v827 = vmax.f32 %v795, 1e-06
        %v828 = vmax.f32 %v796, 1e-06
        %v829 = vmax.f32 %v797, 1e-06
        %v830 = vmax.f32 %v798, 1e-06
        %v831 = vmax.f32 %v799, 1e-06
        %v832 = vmax.f32 %v800, 1e-06
        %v833 = vmax.f32 %v801, 1e-06
        %v834 = vmax.f32 %v802, 1e-06
        %v835 = vmax.f32 %v803, 1e-06
        %v836 = vmax.f32 %v804, 1e-06
        %v837 = vmax.f32 %v805, 1e-06
        %v838 = vmax.f32 %v806, 1e-06
        %v839 = vmax.f32 %v807, 1e-06
        %v840 = vmax.f32 %v808, 1e-06
        %v841 = vmax.f32 %v809, 1e-06
        %v842 = vmax.f32 %v810, 1e-06
        %v843 = vld [vmem:[#allocation13] sm:$0xff]
        %v844 = vld [vmem:[#allocation13 + $0x8] sm:$0xff]
        %v845 = vld [vmem:[#allocation13 + $0x10] sm:$0xff]
        %v846 = vld [vmem:[#allocation13 + $0x18] sm:$0xff]
        %v847 = vld [vmem:[#allocation13 + $0x20] sm:$0xff]
        %v848 = vld [vmem:[#allocation13 + $0x28] sm:$0xff]
        %v849 = vld [vmem:[#allocation13 + $0x30] sm:$0xff]
        %v850 = vld [vmem:[#allocation13 + $0x38] sm:$0xff]
        %v851 = vld [vmem:[#allocation13 + $0x40] sm:$0xff]
        %v852 = vld [vmem:[#allocation13 + $0x48] sm:$0xff]
        %v853 = vld [vmem:[#allocation13 + $0x50] sm:$0xff]
        %v854 = vld [vmem:[#allocation13 + $0x58] sm:$0xff]
        %v855 = vld [vmem:[#allocation13 + $0x60] sm:$0xff]
        %v856 = vld [vmem:[#allocation13 + $0x68] sm:$0xff]
        %v857 = vld [vmem:[#allocation13 + $0x70] sm:$0xff]
        %v858 = vld [vmem:[#allocation13 + $0x78] sm:$0xff]
        %v859 = vld [vmem:[#allocation13 + $0x80] sm:$0xff]
        %v860 = vld [vmem:[#allocation13 + $0x88] sm:$0xff]
        %v861 = vld [vmem:[#allocation13 + $0x90] sm:$0xff]
        %v862 = vld [vmem:[#allocation13 + $0x98] sm:$0xff]
        %v863 = vld [vmem:[#allocation13 + $0xa0] sm:$0xff]
        %v864 = vld [vmem:[#allocation13 + $0xa8] sm:$0xff]
        %v865 = vld [vmem:[#allocation13 + $0xb0] sm:$0xff]
        %v866 = vld [vmem:[#allocation13 + $0xb8] sm:$0xff]
        %v867 = vld [vmem:[#allocation13 + $0xc0] sm:$0xff]
        %v868 = vld [vmem:[#allocation13 + $0xc8] sm:$0xff]
        %v869 = vld [vmem:[#allocation13 + $0xd0] sm:$0xff]
        %v870 = vld [vmem:[#allocation13 + $0xd8] sm:$0xff]
        %v871 = vld [vmem:[#allocation13 + $0xe0] sm:$0xff]
        %v872 = vld [vmem:[#allocation13 + $0xe8] sm:$0xff]
        %v873 = vld [vmem:[#allocation13 + $0xf0] sm:$0xff]
        %v874 = vld [vmem:[#allocation13 + $0xf8] sm:$0xff]
        %v875 = vmul.f32 %v811, %v843
        %v876 = vmul.f32 %v812, %v844
        %v877 = vmul.f32 %v813, %v845
        %v878 = vmul.f32 %v814, %v846
        %v879 = vmul.f32 %v815, %v847
        %v880 = vmul.f32 %v816, %v848
        %v881 = vmul.f32 %v817, %v849
        %v882 = vmul.f32 %v818, %v850
        %v883 = vmul.f32 %v819, %v851
        %v884 = vmul.f32 %v820, %v852
        %v885 = vmul.f32 %v821, %v853
        %v886 = vmul.f32 %v822, %v854
        %v887 = vmul.f32 %v823, %v855
        %v888 = vmul.f32 %v824, %v856
        %v889 = vmul.f32 %v825, %v857
        %v890 = vmul.f32 %v826, %v858
        %v891 = vmul.f32 %v827, %v859
        %v892 = vmul.f32 %v828, %v860
        %v893 = vmul.f32 %v829, %v861
        %v894 = vmul.f32 %v830, %v862
        %v895 = vmul.f32 %v831, %v863
        %v896 = vmul.f32 %v832, %v864
        %v897 = vmul.f32 %v833, %v865
        %v898 = vmul.f32 %v834, %v866
        %v899 = vmul.f32 %v835, %v867
        %v900 = vmul.f32 %v836, %v868
        %v901 = vmul.f32 %v837, %v869
        %v902 = vmul.f32 %v838, %v870
        %v903 = vmul.f32 %v839, %v871
        %v904 = vmul.f32 %v840, %v872
        %v905 = vmul.f32 %v841, %v873
        %v906 = vmul.f32 %v842, %v874
        %v907 = vadd.f32 %v747, %v875
        %v908 = vadd.f32 %v748, %v876
        %v909 = vadd.f32 %v749, %v877
        %v910 = vadd.f32 %v750, %v878
        %v911 = vadd.f32 %v751, %v879
        %v912 = vadd.f32 %v752, %v880
        %v913 = vadd.f32 %v753, %v881
        %v914 = vadd.f32 %v754, %v882
        %v915 = vadd.f32 %v755, %v883
        %v916 = vadd.f32 %v756, %v884
        %v917 = vadd.f32 %v757, %v885
        %v918 = vadd.f32 %v758, %v886
        %v919 = vadd.f32 %v759, %v887
        %v920 = vadd.f32 %v760, %v888
        %v921 = vadd.f32 %v761, %v889
        %v922 = vadd.f32 %v762, %v890
        %v923 = vadd.f32 %v763, %v891
        %v924 = vadd.f32 %v764, %v892
        %v925 = vadd.f32 %v765, %v893
        %v926 = vadd.f32 %v766, %v894
        %v927 = vadd.f32 %v767, %v895
        %v928 = vadd.f32 %v768, %v896
        %v929 = vadd.f32 %v769, %v897
        %v930 = vadd.f32 %v770, %v898
        %v931 = vadd.f32 %v771, %v899
        %v932 = vadd.f32 %v772, %v900
        %v933 = vadd.f32 %v773, %v901
        %v934 = vadd.f32 %v774, %v902
        %v935 = vadd.f32 %v775, %v903
        %v936 = vadd.f32 %v776, %v904
        %v937 = vadd.f32 %v777, %v905
        %v938 = vadd.f32 %v778, %v906
        %v939 = vld [vmem:[%s10] sm:$0x1]
        %v940 = vld [vmem:[%s11] sm:$0x1]
        %v941 = vmax.f32 %v940, 1e-06
        %v942 = vld [vmem:[%s12] sm:$0x1]
        %v943 = vmul.f32 %v941, %v942
        %v944 = vadd.f32 %v939, %v943
        %v945 = vld [vmem:[%s479] sm:$0xff]
        %v946 = vld [vmem:[%s479 + $0x8] sm:$0xff]
        %v947 = vld [vmem:[%s479 + $0x10] sm:$0xff]
        %v948 = vld [vmem:[%s479 + $0x18] sm:$0xff]
        %v949 = vld [vmem:[%s479 + $0x20] sm:$0xff]
        %v950 = vld [vmem:[%s479 + $0x28] sm:$0xff]
        %v951 = vld [vmem:[%s479 + $0x30] sm:$0xff]
        %v952 = vld [vmem:[%s479 + $0x38] sm:$0xff]
        %v953 = vld [vmem:[%s479 + $0x40] sm:$0xff]
        %v954 = vld [vmem:[%s479 + $0x48] sm:$0xff]
        %v955 = vld [vmem:[%s479 + $0x50] sm:$0xff]
        %v956 = vld [vmem:[%s479 + $0x58] sm:$0xff]
        %v957 = vld [vmem:[%s479 + $0x60] sm:$0xff]
        %v958 = vld [vmem:[%s479 + $0x68] sm:$0xff]
        %v959 = vld [vmem:[%s479 + $0x70] sm:$0xff]
        %v960 = vld [vmem:[%s479 + $0x78] sm:$0xff]
        %v961 = vpack.c.bf16 %v946, %v945
        %v962 = vpack.c.bf16 %v948, %v947
        %v963 = vpack.c.bf16 %v950, %v949
        %v964 = vpack.c.bf16 %v952, %v951
        %v965 = vpack.c.bf16 %v954, %v953
        %v966 = vpack.c.bf16 %v956, %v955
        %v967 = vpack.c.bf16 %v958, %v957
        %v968 = vpack.c.bf16 %v960, %v959
        %v969 = vpack.c.bf16 %v711, %v709
        %v970 = vpack.c.bf16 %v712, %v710
        %v971 = vpack.c.bf16 %v715, %v713
        %v972 = vpack.c.bf16 %v716, %v714
        %v973 = vpack.c.bf16 %v719, %v717
        %v974 = vpack.c.bf16 %v720, %v718
        %v975 = vpack.c.bf16 %v723, %v721
        %v976 = vpack.c.bf16 %v724, %v722
        %v977 = vpack.c.bf16 %v727, %v725
        %v978 = vpack.c.bf16 %v728, %v726
        %v979 = vpack.c.bf16 %v731, %v729
        %v980 = vpack.c.bf16 %v732, %v730
        %v981 = vpack.c.bf16 %v735, %v733
        %v982 = vpack.c.bf16 %v736, %v734
        %v983 = vpack.c.bf16 %v739, %v737
        %v984 = vpack.c.bf16 %v740, %v738
        %v986 = vlaneseq
        %v987 = vshrl.u32 %v986, 7
        %v988 = vsub.s32 0, %v987
        %v989 = vrot.slane %v746, %v988
        %v990 = vlaneseq
        %v991 = vshrl.u32 %v990, 7
        %v992 = vsub.s32 1, %v991
        %v993 = vrot.slane %v746, %v992
        %996 = vmatprep.subr.bf16.mxu0 %v970
        %997 = vmatpush1.bf16.msra.mxu0 %v969
        %998 = vmatprep.subr.bf16.mxu0 %v972
        %999 = vmatpush1.bf16.msra.mxu0 %v971
        %1000 = vmatprep.subr.bf16.mxu0 %v974
        %1001 = vmatpush1.bf16.msra.mxu0 %v973
        %1002 = vmatprep.subr.bf16.mxu0 %v976
        %1003 = vmatpush1.bf16.msra.mxu0 %v975
        %1004 = vmatprep.subr.bf16.mxu0 %v978
        %1005 = vmatpush1.bf16.msra.mxu0 %v977
        %1006 = vmatprep.subr.bf16.mxu0 %v980
        %1007 = vmatpush1.bf16.msra.mxu0 %v979
        %1008 = vmatprep.subr.bf16.mxu0 %v982
        %1009 = vmatpush1.bf16.msra.mxu0 %v981
        %1010 = vmatprep.subr.bf16.mxu0 %v984
        %1011 = vmatpush1.bf16.msra.mxu0 %v983
        %1012 = vmatprep.subr.bf16.mxu0 0
        %1013 = vmatpush1.bf16.msra.mxu0 0
        %1014 = vmatprep.subr.bf16.mxu0 0
        %1015 = vmatpush1.bf16.msra.mxu0 0
        %1016 = vmatprep.subr.bf16.mxu0 0
        %1017 = vmatpush1.bf16.msra.mxu0 0
        %1018 = vmatprep.subr.bf16.mxu0 0
        %1019 = vmatpush1.bf16.msra.mxu0 0
        %1020 = vmatprep.subr.bf16.mxu0 0
        %1021 = vmatpush1.bf16.msra.mxu0 0
        %1022 = vmatprep.subr.bf16.mxu0 0
        %1023 = vmatpush1.bf16.msra.mxu0 0
        %1024 = vmatprep.subr.bf16.mxu0 0
        %1025 = vmatpush1.bf16.msra.mxu0 0
        %1026 = vmatprep.subr.bf16.mxu0 0
        %1027 = vmatpush1.bf16.msra.mxu0 0
        %1028 = vmatprep.mubr.bf16.mxu0 0
        %1029 = vmatmul.mubr.bf16.gmra.mrb[0].mxu0 %v961
        %v1030 = vpop.f32.mrb[0].mxu0
        %v1031 = vadd.f32 %v989, %v1030
        %v1032 = vpop.f32.mrb[0].mxu0
        %v1033 = vadd.f32 %v993, %v1032
        %v1034 = vpop.f32.mrb[0].mxu0
        %v1035 = vadd.f32 %v989, %v1034
        %v1036 = vpop.f32.mrb[0].mxu0
        %v1037 = vadd.f32 %v993, %v1036
        %1038 = vmatprep.mubr.bf16.mxu0 0
        %1039 = vmatmul.mubr.bf16.gmra.mrb[0].mxu0 %v962
        %v1040 = vpop.f32.mrb[0].mxu0
        %v1041 = vadd.f32 %v989, %v1040
        %v1042 = vpop.f32.mrb[0].mxu0
        %v1043 = vadd.f32 %v993, %v1042
        %v1044 = vpop.f32.mrb[0].mxu0
        %v1045 = vadd.f32 %v989, %v1044
        %v1046 = vpop.f32.mrb[0].mxu0
        %v1047 = vadd.f32 %v993, %v1046
        %1048 = vmatprep.mubr.bf16.mxu0 0
        %1049 = vmatmul.mubr.bf16.gmra.mrb[0].mxu0 %v963
        %v1050 = vpop.f32.mrb[0].mxu0
        %v1051 = vadd.f32 %v989, %v1050
        %v1052 = vpop.f32.mrb[0].mxu0
        %v1053 = vadd.f32 %v993, %v1052
        %v1054 = vpop.f32.mrb[0].mxu0
        %v1055 = vadd.f32 %v989, %v1054
        %v1056 = vpop.f32.mrb[0].mxu0
        %v1057 = vadd.f32 %v993, %v1056
        %1058 = vmatprep.mubr.bf16.mxu0 0
        %1059 = vmatmul.mubr.bf16.gmra.mrb[0].mxu0 %v964
        %v1060 = vpop.f32.mrb[0].mxu0
        %v1061 = vadd.f32 %v989, %v1060
        %v1062 = vpop.f32.mrb[0].mxu0
        %v1063 = vadd.f32 %v993, %v1062
        %v1064 = vpop.f32.mrb[0].mxu0
        %v1065 = vadd.f32 %v989, %v1064
        %v1066 = vpop.f32.mrb[0].mxu0
        %v1067 = vadd.f32 %v993, %v1066
        %1068 = vmatprep.mubr.bf16.mxu0 0
        %1069 = vmatmul.mubr.bf16.gmra.mrb[0].mxu0 %v965
        %v1070 = vpop.f32.mrb[0].mxu0
        %v1071 = vadd.f32 %v989, %v1070
        %v1072 = vpop.f32.mrb[0].mxu0
        %v1073 = vadd.f32 %v993, %v1072
        %v1074 = vpop.f32.mrb[0].mxu0
        %v1075 = vadd.f32 %v989, %v1074
        %v1076 = vpop.f32.mrb[0].mxu0
        %v1077 = vadd.f32 %v993, %v1076
        %1078 = vmatprep.mubr.bf16.mxu0 0
        %1079 = vmatmul.mubr.bf16.gmra.mrb[0].mxu0 %v966
        %v1080 = vpop.f32.mrb[0].mxu0
        %v1081 = vadd.f32 %v989, %v1080
        %v1082 = vpop.f32.mrb[0].mxu0
        %v1083 = vadd.f32 %v993, %v1082
        %v1084 = vpop.f32.mrb[0].mxu0
        %v1085 = vadd.f32 %v989, %v1084
        %v1086 = vpop.f32.mrb[0].mxu0
        %v1087 = vadd.f32 %v993, %v1086
        %1088 = vmatprep.mubr.bf16.mxu0 0
        %1089 = vmatmul.mubr.bf16.gmra.mrb[0].mxu0 %v967
        %v1090 = vpop.f32.mrb[0].mxu0
        %v1091 = vadd.f32 %v989, %v1090
        %v1092 = vpop.f32.mrb[0].mxu0
        %v1093 = vadd.f32 %v993, %v1092
        %v1094 = vpop.f32.mrb[0].mxu0
        %v1095 = vadd.f32 %v989, %v1094
        %v1096 = vpop.f32.mrb[0].mxu0
        %v1097 = vadd.f32 %v993, %v1096
        %1098 = vmatprep.mubr.bf16.mxu0 0
        %1099 = vmatmul.mubr.bf16.gmra.mrb[0].mxu0 %v968
        %v1100 = vpop.f32.mrb[0].mxu0
        %v1101 = vadd.f32 %v989, %v1100
        %v1102 = vpop.f32.mrb[0].mxu0
        %v1103 = vadd.f32 %v993, %v1102
        %v1104 = vpop.f32.mrb[0].mxu0
        %v1105 = vadd.f32 %v989, %v1104
        %v1106 = vpop.f32.mrb[0].mxu0
        %v1107 = vadd.f32 %v993, %v1106
        %1108 = vdwg.mxu0
        %v1109 = vmax.f32 %v1031, 0.0
        %v1110 = vmax.f32 %v1033, 0.0
        %v1111 = vmax.f32 %v1035, 0.0
        %v1112 = vmax.f32 %v1037, 0.0
        %v1113 = vmax.f32 %v1041, 0.0
        %v1114 = vmax.f32 %v1043, 0.0
        %v1115 = vmax.f32 %v1045, 0.0
        %v1116 = vmax.f32 %v1047, 0.0
        %v1117 = vmax.f32 %v1051, 0.0
        %v1118 = vmax.f32 %v1053, 0.0
        %v1119 = vmax.f32 %v1055, 0.0
        %v1120 = vmax.f32 %v1057, 0.0
        %v1121 = vmax.f32 %v1061, 0.0
        %v1122 = vmax.f32 %v1063, 0.0
        %v1123 = vmax.f32 %v1065, 0.0
        %v1124 = vmax.f32 %v1067, 0.0
        %v1125 = vmax.f32 %v1071, 0.0
        %v1126 = vmax.f32 %v1073, 0.0
        %v1127 = vmax.f32 %v1075, 0.0
        %v1128 = vmax.f32 %v1077, 0.0
        %v1129 = vmax.f32 %v1081, 0.0
        %v1130 = vmax.f32 %v1083, 0.0
        %v1131 = vmax.f32 %v1085, 0.0
        %v1132 = vmax.f32 %v1087, 0.0
        %v1133 = vmax.f32 %v1091, 0.0
        %v1134 = vmax.f32 %v1093, 0.0
        %v1135 = vmax.f32 %v1095, 0.0
        %v1136 = vmax.f32 %v1097, 0.0
        %v1137 = vmax.f32 %v1101, 0.0
        %v1138 = vmax.f32 %v1103, 0.0
        %v1139 = vmax.f32 %v1105, 0.0
        %v1140 = vmax.f32 %v1107, 0.0
        %v1141 = vpack.c.bf16 %v1111, %v1109
        %v1142 = vpack.c.bf16 %v1112, %v1110
        %v1143 = vpack.c.bf16 %v1115, %v1113
        %v1144 = vpack.c.bf16 %v1116, %v1114
        %v1145 = vpack.c.bf16 %v1119, %v1117
        %v1146 = vpack.c.bf16 %v1120, %v1118
        %v1147 = vpack.c.bf16 %v1123, %v1121
        %v1148 = vpack.c.bf16 %v1124, %v1122
        %v1149 = vpack.c.bf16 %v1127, %v1125
        %v1150 = vpack.c.bf16 %v1128, %v1126
        %v1151 = vpack.c.bf16 %v1131, %v1129
        %v1152 = vpack.c.bf16 %v1132, %v1130
        %v1153 = vpack.c.bf16 %v1135, %v1133
        %v1154 = vpack.c.bf16 %v1136, %v1134
        %v1155 = vpack.c.bf16 %v1139, %v1137
        %v1156 = vpack.c.bf16 %v1140, %v1138
        %v1157 = vpack.c.bf16 %v908, %v907
        %v1158 = vpack.c.bf16 %v910, %v909
        %v1159 = vpack.c.bf16 %v912, %v911
        %v1160 = vpack.c.bf16 %v914, %v913
        %v1161 = vpack.c.bf16 %v916, %v915
        %v1162 = vpack.c.bf16 %v918, %v917
        %v1163 = vpack.c.bf16 %v920, %v919
        %v1164 = vpack.c.bf16 %v922, %v921
        %v1165 = vpack.c.bf16 %v924, %v923
        %v1166 = vpack.c.bf16 %v926, %v925
        %v1167 = vpack.c.bf16 %v928, %v927
        %v1168 = vpack.c.bf16 %v930, %v929
        %v1169 = vpack.c.bf16 %v932, %v931
        %v1170 = vpack.c.bf16 %v934, %v933
        %v1171 = vpack.c.bf16 %v936, %v935
        %v1172 = vpack.c.bf16 %v938, %v937
        %v1174 = vlaneseq
        %v1175 = vshrl.u32 %v1174, 7
        %v1176 = vsub.s32 0, %v1175
        %v1177 = vrot.slane %v944, %v1176
        %1179 = vmatprep.subr.bf16.mxu0 0
        %1180 = vmatpush1.bf16.msra.mxu0 %v1157
        %1181 = vmatprep.subr.bf16.mxu0 0
        %1182 = vmatpush1.bf16.msra.mxu0 %v1158
        %1183 = vmatprep.subr.bf16.mxu0 0
        %1184 = vmatpush1.bf16.msra.mxu0 %v1159
        %1185 = vmatprep.subr.bf16.mxu0 0
        %1186 = vmatpush1.bf16.msra.mxu0 %v1160
        %1187 = vmatprep.subr.bf16.mxu0 0
        %1188 = vmatpush1.bf16.msra.mxu0 %v1161
        %1189 = vmatprep.subr.bf16.mxu0 0
        %1190 = vmatpush1.bf16.msra.mxu0 %v1162
        %1191 = vmatprep.subr.bf16.mxu0 0
        %1192 = vmatpush1.bf16.msra.mxu0 %v1163
        %1193 = vmatprep.subr.bf16.mxu0 0
        %1194 = vmatpush1.bf16.msra.mxu0 %v1164
        %1195 = vmatprep.subr.bf16.mxu0 0
        %1196 = vmatpush1.bf16.msra.mxu0 %v1165
        %1197 = vmatprep.subr.bf16.mxu0 0
        %1198 = vmatpush1.bf16.msra.mxu0 %v1166
        %1199 = vmatprep.subr.bf16.mxu0 0
        %1200 = vmatpush1.bf16.msra.mxu0 %v1167
        %1201 = vmatprep.subr.bf16.mxu0 0
        %1202 = vmatpush1.bf16.msra.mxu0 %v1168
        %1203 = vmatprep.subr.bf16.mxu0 0
        %1204 = vmatpush1.bf16.msra.mxu0 %v1169
        %1205 = vmatprep.subr.bf16.mxu0 0
        %1206 = vmatpush1.bf16.msra.mxu0 %v1170
        %1207 = vmatprep.subr.bf16.mxu0 0
        %1208 = vmatpush1.bf16.msra.mxu0 %v1171
        %1209 = vmatprep.subr.bf16.mxu0 0
        %1210 = vmatpush1.bf16.msra.mxu0 %v1172
        %1211 = vmatprep.mubr.bf16.mxu0 %v1142
        %1212 = vmatmul.mubr.bf16.gmra.mrb[0].mxu0 %v1141
        %v1213 = vpop.f32.mrb[0].mxu0
        %v1214 = vadd.f32 %v1177, %v1213
        %v1215 = vpop.f32.mrb[0].mxu0
        %v1216 = vpop.f32.mrb[0].mxu0
        %v1217 = vadd.f32 %v1177, %v1216
        %v1218 = vpop.f32.mrb[0].mxu0
        %1219 = vmatprep.mubr.bf16.mxu0 %v1144
        %1220 = vmatmul.mubr.bf16.gmra.mrb[0].mxu0 %v1143
        %v1221 = vpop.f32.mrb[0].mxu0
        %v1222 = vadd.f32 %v1177, %v1221
        %v1223 = vpop.f32.mrb[0].mxu0
        %v1224 = vpop.f32.mrb[0].mxu0
        %v1225 = vadd.f32 %v1177, %v1224
        %v1226 = vpop.f32.mrb[0].mxu0
        %1227 = vmatprep.mubr.bf16.mxu0 %v1146
        %1228 = vmatmul.mubr.bf16.gmra.mrb[0].mxu0 %v1145
        %v1229 = vpop.f32.mrb[0].mxu0
        %v1230 = vadd.f32 %v1177, %v1229
        %v1231 = vpop.f32.mrb[0].mxu0
        %v1232 = vpop.f32.mrb[0].mxu0
        %v1233 = vadd.f32 %v1177, %v1232
        %v1234 = vpop.f32.mrb[0].mxu0
        %1235 = vmatprep.mubr.bf16.mxu0 %v1148
        %1236 = vmatmul.mubr.bf16.gmra.mrb[0].mxu0 %v1147
        %v1237 = vpop.f32.mrb[0].mxu0
        %v1238 = vadd.f32 %v1177, %v1237
        %v1239 = vpop.f32.mrb[0].mxu0
        %v1240 = vpop.f32.mrb[0].mxu0
        %v1241 = vadd.f32 %v1177, %v1240
        %v1242 = vpop.f32.mrb[0].mxu0
        %1243 = vmatprep.mubr.bf16.mxu0 %v1150
        %1244 = vmatmul.mubr.bf16.gmra.mrb[0].mxu0 %v1149
        %v1245 = vpop.f32.mrb[0].mxu0
        %v1246 = vadd.f32 %v1177, %v1245
        %v1247 = vpop.f32.mrb[0].mxu0
        %v1248 = vpop.f32.mrb[0].mxu0
        %v1249 = vadd.f32 %v1177, %v1248
        %v1250 = vpop.f32.mrb[0].mxu0
        %1251 = vmatprep.mubr.bf16.mxu0 %v1152
        %1252 = vmatmul.mubr.bf16.gmra.mrb[0].mxu0 %v1151
        %v1253 = vpop.f32.mrb[0].mxu0
        %v1254 = vadd.f32 %v1177, %v1253
        %v1255 = vpop.f32.mrb[0].mxu0
        %v1256 = vpop.f32.mrb[0].mxu0
        %v1257 = vadd.f32 %v1177, %v1256
        %v1258 = vpop.f32.mrb[0].mxu0
        %1259 = vmatprep.mubr.bf16.mxu0 %v1154
        %1260 = vmatmul.mubr.bf16.gmra.mrb[0].mxu0 %v1153
        %v1261 = vpop.f32.mrb[0].mxu0
        %v1262 = vadd.f32 %v1177, %v1261
        %v1263 = vpop.f32.mrb[0].mxu0
        %v1264 = vpop.f32.mrb[0].mxu0
        %v1265 = vadd.f32 %v1177, %v1264
        %v1266 = vpop.f32.mrb[0].mxu0
        %1267 = vmatprep.mubr.bf16.mxu0 %v1156
        %1268 = vmatmul.mubr.bf16.gmra.mrb[0].mxu0 %v1155
        %v1269 = vpop.f32.mrb[0].mxu0
        %v1270 = vadd.f32 %v1177, %v1269
        %v1271 = vpop.f32.mrb[0].mxu0
        %v1272 = vpop.f32.mrb[0].mxu0
        %v1273 = vadd.f32 %v1177, %v1272
        %v1274 = vpop.f32.mrb[0].mxu0
        %1275 = vdwg.mxu0
        %1276 = vst [vmem:[%s545] sm:$0xff] %v1214
        %1277 = vst [vmem:[%s545 + $0x8] sm:$0xff] %v1217
        %1278 = vst [vmem:[%s545 + $0x10] sm:$0xff] %v1222
        %1279 = vst [vmem:[%s545 + $0x18] sm:$0xff] %v1225
        %1280 = vst [vmem:[%s545 + $0x20] sm:$0xff] %v1230
        %1281 = vst [vmem:[%s545 + $0x28] sm:$0xff] %v1233
        %1282 = vst [vmem:[%s545 + $0x30] sm:$0xff] %v1238
        %1283 = vst [vmem:[%s545 + $0x38] sm:$0xff] %v1241
        %1284 = vst [vmem:[%s545 + $0x40] sm:$0xff] %v1246
        %1285 = vst [vmem:[%s545 + $0x48] sm:$0xff] %v1249
        %1286 = vst [vmem:[%s545 + $0x50] sm:$0xff] %v1254
        %1287 = vst [vmem:[%s545 + $0x58] sm:$0xff] %v1257
        %1288 = vst [vmem:[%s545 + $0x60] sm:$0xff] %v1262
        %1289 = vst [vmem:[%s545 + $0x68] sm:$0xff] %v1265
        %1290 = vst [vmem:[%s545 + $0x70] sm:$0xff] %v1270
        %1291 = vst [vmem:[%s545 + $0x78] sm:$0xff] %v1273
        %s1292 = sand.u32 %s319, 1
        %s1293 = scalar_lea.sflag [#allocation4], %s1292
        %s1294 = sand.u32 %s319, 1
        %s1295 = smul.addr %s1294, 128
        %s1296 = scalar_lea.vmem [#allocation14], %s1295
        // Predicated region
        $region101: #{tpu_custom_call.1} parent=71 // pred_check
          %p1297 = pneg %p329
        $region102: #{tpu_custom_call.1} parent=71 // pred_check_branch
          %1299 = sbr.rel (%p1297) target = $region104
        $region103: #{tpu_custom_call.1} parent=71 // pred_region
          %s1300 = smul.u32 16, %s33
          %s1302 = ssub.s32 2048, 2048
          %1303 = vsyncadd %s1293, %s1302
          %s1304 = smul.addr %s1300, 128
          %s1305 = scalar_lea.hbm %s13, %s1304
          %s1306 = sshll.u32 %s1296, 4
          %s1307 = int_to_ptr.vmem [resolvable:$true] %s1306
          %1312 = dma.vmem_to_hbm [thread:$0]  %s1307, 2048, %s1305, %s1293, 128, 128, 8
        $region104: #{tpu_custom_call.1} parent=71 // pred_fallthru
          _
      $region72: #{tpu_custom_call.1} parent=5 // pred_fallthru
        _
      %p1313 = scmp.le.s32.totalorder 2, %s28
      // Predicated region
      $region105: #{tpu_custom_call.1} parent=5 // pred_check
        %p1314 = pneg %p1313
      $region106: #{tpu_custom_call.1} parent=5 // pred_check_branch
        %1316 = sbr.rel (%p1314) target = $region108
      $region107: #{tpu_custom_call.1} parent=5 // pred_region
        %s1317 = ssub.s32 %s28, 2
        // Predicated region
        $region109: #{tpu_custom_call.1} parent=107 // pred_check
          %p1318 = pneg %p335
        $region110: #{tpu_custom_call.1} parent=107 // pred_check_branch
          %1320 = sbr.rel (%p1318) target = $region112
        $region111: #{tpu_custom_call.1} parent=107 // pred_region
          %s1321 = sand.u32 %s320, 1
          %s1322 = scalar_lea.sflag [#allocation4], %s1321
          %s1323 = sand.u32 %s320, 1
          %s1324 = smul.addr %s1323, 128
          %s1325 = scalar_lea.vmem [#allocation14], %s1324
          %1326 = dma.done %s1322, 2048
        $region112: #{tpu_custom_call.1} parent=107 // pred_fallthru
          _
      $region108: #{tpu_custom_call.1} parent=5 // pred_fallthru
        _
    $region6: #{tpu_custom_call.1} parent=1 // loop_footer
      %s32 = sadd.s32 1, %s28
    $region7: #{tpu_custom_call.1} parent=1 // loop_footer_branch
      %27 = sbr.rel target = $region3
    $region8: #{tpu_custom_call.1} parent=1 // loop_exit
      _
    %1327 = vsyncpa [#allocation3], 1
    %s1328 = scalar_lea.sflag [#allocation3], 1
    %1329 = vsyncpa %s1328, 1
    %1330 = vsyncpa [#allocation6], 1
    %1331 = vsyncpa [#allocation9], 1
    %1332 = vsyncpa [#allocation12], 1
    %1333 = vsyncpa [#allocation4], 1
    %s1334 = scalar_lea.sflag [#allocation4], 1
    %1335 = vsyncpa %s1334, 1

</llo_original>
